<compile_context>
chip_gen: v7x
topology: tpu7x:2x2x1
jax: 0.10.0
libtpu: 0.0.40
codegen_flags: <defaults>
</compile_context>

<pallas_src>
import numpy as np
import jax
import jax.numpy as jnp
from jax.experimental import pallas as pl
from jax.experimental.pallas import tpu as pltpu


# ----------------------------- complex matmuls -------------------------------

def _cmatmul_const_lhs(ar, ai, a_sum, br, bi):
    """(ar + i*ai) @ (br + i*bi), Karatsuba form, constant LHS:
    a_sum = ar + ai is precomputed on the host."""
    t1 = jnp.dot(ar, br, preferred_element_type=jnp.float32)
    t2 = jnp.dot(ai, bi, preferred_element_type=jnp.float32)
    t3 = jnp.dot(a_sum, br + bi, preferred_element_type=jnp.float32)
    return t1 - t2, t3 - t1 - t2


def _cmatmul_const_rhs(ar, ai, br, bi, b_sum):
    """(ar + i*ai) @ (br + i*bi), Karatsuba form, constant RHS:
    b_sum = br + bi is precomputed on the host."""
    t1 = jnp.dot(ar, br, preferred_element_type=jnp.float32)
    t2 = jnp.dot(ai, bi, preferred_element_type=jnp.float32)
    t3 = jnp.dot(ar + ai, b_sum, preferred_element_type=jnp.float32)
    return t1 - t2, t3 - t1 - t2


# ----------------------------- Pallas kernel --------------------------------

def _make_asm_kernel(compute_dtype):
    """Kernel processing one (channel, image) pair per grid step."""
    cdt = compute_dtype

    def kernel(ph_ref, fy_ref, fxt_ref, gy_ref, gxt_ref, h_ref,
               amp_ref, phs_ref):
        ph = ph_ref[0, 0]                                  # (H, W) f32
        ur = jnp.cos(ph).astype(cdt)                       # slm_field = exp(1j*phase)
        ui = jnp.sin(ph).astype(cdt)

        fyr, fyi, fys = fy_ref[0], fy_ref[1], fy_ref[2]       # (2H, H)  pad baked in
        fxtr, fxti, fxts = fxt_ref[0], fxt_ref[1], fxt_ref[2]  # (W, 2W)  pad baked in
        gyr, gyi, gys = gy_ref[0], gy_ref[1], gy_ref[2]       # (H, 2H)  crop baked in
        gxtr, gxti, gxts = gxt_ref[0], gxt_ref[1], gxt_ref[2]  # (2W, W)  crop baked in
        hr = h_ref[0, 0].astype(jnp.float32)                  # (2H, 2W) transfer fn
        hi = h_ref[0, 1].astype(jnp.float32)

        # forward row (y) DFT
        tr, ti = _cmatmul_const_lhs(fyr, fyi, fys, ur, ui)              # (2H, W) f32
        # forward column (x) DFT
        u1r, u1i = _cmatmul_const_rhs(tr.astype(cdt), ti.astype(cdt),
                                      fxtr, fxti, fxts)                 # (2H, 2W) f32
        # band-limited ASM transfer function: U2 = H * U1 (f32 VPU)
        u2r = hr * u1r - hi * u1i
        u2i = hr * u1i + hi * u1r
        # inverse row (y) DFT with center crop baked in
        sr, si = _cmatmul_const_lhs(gyr, gyi, gys,
                                    u2r.astype(cdt), u2i.astype(cdt))   # (H, 2W) f32
        # inverse column (x) DFT with crop baked in
        outr, outi = _cmatmul_const_rhs(sr.astype(cdt), si.astype(cdt),
                                        gxtr, gxti, gxts)               # (H, W) f32

        amp_ref[0, 0] = jnp.sqrt(outr * outr + outi * outi)   # output_field.abs()
        phs_ref[0, 0] = jnp.arctan2(outi, outr)               # output_field.angle()

    return kernel


# ----------------------------- host-side helpers ------------------------------

def _dft_factors(H, W):
    """Ortho DFT factor matrices with the fft shifts, the zero padding to
    (2H, 2W) and the final center crop all baked in:

        Fy_cols @ u @ FxT_rows  == fft2(ifftshift(zero_pad(u)), norm='ortho')
        Gy_crop @ U @ GxT_crop  == center-crop(fftshift(ifft2(U, norm='ortho')))
    """
    def fwd(N):  # F @ x == fft(ifftshift(x), norm='ortho')
        n = np.arange(N)
        Wm = np.exp(-2j * np.pi * np.outer(n, n) / N) / np.sqrt(N)
        return Wm[:, np.argsort(np.fft.ifftshift(n))]

    def inv(N):  # G @ X == fftshift(ifft(X, norm='ortho'))
        n = np.arange(N)
        Wi = np.exp(2j * np.pi * np.outer(n, n) / N) / np.sqrt(N)
        return Wi[np.fft.fftshift(n), :]

    H2, W2 = 2 * H, 2 * W
    py0, px0 = H // 2, W // 2            # pad offset == crop offset (center)
    Fy, Gy = fwd(H2), inv(H2)
    Fx, Gx = fwd(W2), inv(W2)
    Fy_cols = Fy[:, py0:py0 + H]                 # (2H, H)
    FxT_rows = Fx.T[px0:px0 + W, :]              # (W, 2W)
    Gy_crop = Gy[py0:py0 + H, :]                 # (H, 2H)
    GxT_crop = Gx.T[:, px0:px0 + W]              # (2W, W)
    return Fy_cols, FxT_rows, Gy_crop, GxT_crop


def _transfer_function(wavelengths, feature_size, z, num_y, num_x):
    """Band-limited ASM transfer function (Matsushima 2009), ifftshifted."""
    dy, dx = feature_size
    y_len, x_len = dy * num_y, dx * num_x
    fy = np.linspace(-1 / (2 * dy) + 0.5 / (2 * y_len),
                     1 / (2 * dy) - 0.5 / (2 * y_len), num_y)
    fx = np.linspace(-1 / (2 * dx) + 0.5 / (2 * x_len),
                     1 / (2 * dx) - 0.5 / (2 * x_len), num_x)
    FX, FY = np.meshgrid(fx, fy)
    Hs = []
    for wl in wavelengths:
        H_exp = 2 * np.pi * np.sqrt(
            np.maximum(1.0 / wl ** 2 - (FX ** 2 + FY ** 2), 0.0)) * z
        fy_max = 1 / np.sqrt((2 * z * (1 / y_len)) ** 2 + 1) / wl
        fx_max = 1 / np.sqrt((2 * z * (1 / x_len)) ** 2 + 1) / wl
        filt = ((np.abs(FX) < fx_max) & (np.abs(FY) < fy_max)).astype(np.float64)
        Hc = filt * np.cos(H_exp) + 1j * filt * np.sin(H_exp)
        Hs.append(np.fft.ifftshift(Hc))
    return np.stack(Hs, axis=0)  # (C, num_y, num_x) complex


def _vmem_budget(H, W, const_itemsize):
    """Scoped-VMEM budget: single-buffered DFT factors, double-buffered
    streamed tensors, plus live complex intermediates; clamped to a
    generation-aware fraction of physical VMEM (v7x 64 MiB/TC, v5e/v6e 128 MiB)."""
    f32 = 4
    H2, W2 = 2 * H, 2 * W
    consts = 3 * const_itemsize * 2 * (H2 * H + W * W2)        # Fy,Gy,FxT,GxT (1 buf)
    stream = 2 * (2 * const_itemsize * H2 * W2                 # transfer fn (2 buf)
                  + 3 * f32 * H * W)                           # phase + amp + phs (2 buf)
    live = f32 * (10 * H2 * W2 + 8 * H2 * W + 8 * H * W2 + 6 * H * W)
    need = consts + stream + live + (4 << 20)
    try:
        cap = int(pltpu.get_tpu_info().vmem_capacity_bytes * 0.8)
    except Exception:
        cap = 48 << 20            # conservative fallback that fits v7x's 64 MiB/TC
    return int(min(max(need, 32 << 20), cap))


class HoloPropagatorPallas:
    """JAX/Pallas equivalent of holo_propagator.forward(input_phase, prop_dist)."""

    def __init__(self, wavelength, feature_size=(6.4e-6, 6.4e-6),
                 compute_dtype=jnp.bfloat16):
        if isinstance(wavelength, (list, tuple)):
            self.wavelengths = [float(w) for w in wavelength]
        else:
            self.wavelengths = [float(wavelength)]
        self.feature_size = feature_size
        self.compute_dtype = compute_dtype
        self._factor_cache = {}
        self._h_cache = {}    # mirrors the module's precomped_H_exp caching

    def _channel_wavelengths(self, C):
        if len(self.wavelengths) == C:
            return list(self.wavelengths)
        if len(self.wavelengths) == 1:
            return self.wavelengths * C
        raise ValueError(
            f"got {len(self.wavelengths)} wavelengths for {C} channels; "
            "supply 1 or exactly C wavelengths")

    def __call__(self, input_phase, prop_dist):
        B, C, H, W = input_phase.shape
        H2, W2 = 2 * H, 2 * W
        cdt = self.compute_dtype
        cname = np.dtype(cdt).name

        # constant DFT factor matrices, (re, im, re+im) planes, cached per (H, W, dtype)
        fkey = (H, W, cname)
        if fkey not in self._factor_cache:
            Fy_cols, FxT_rows, Gy_crop, GxT_crop = _dft_factors(H, W)
            pack3 = lambda m: jnp.asarray(
                np.stack([m.real, m.imag, m.real + m.imag]), cdt)
            self._factor_cache[fkey] = (pack3(Fy_cols), pack3(FxT_rows),
                                        pack3(Gy_crop), pack3(GxT_crop))
        FY, FXT, GY, GXT = self._factor_cache[fkey]

        # band-limited ASM transfer function per channel, cached per (z, shape, dtype)
        wls = self._channel_wavelengths(C)
        hkey = (float(prop_dist), H, W, tuple(wls), cname)
        if hkey not in self._h_cache:
            Hc = _transfer_function(wls, self.feature_size, float(prop_dist), H2, W2)
            self._h_cache[hkey] = jnp.asarray(
                np.stack([Hc.real, Hc.imag], axis=1), cdt)    # (C, 2, 2H, 2W)
        HC = self._h_cache[hkey]

        ph = input_phase.astype(jnp.float32)                  # NCHW, no repacking

        # constants: identical block every step -> single-buffered
        def const_spec(shape):
            return pl.BlockSpec(shape, lambda c, b: (0,) * len(shape),
                                pipeline_mode=pl.Buffered(1))

        in_specs = [
            pl.BlockSpec((1, 1, H, W), lambda c, b: (b, c, 0, 0)),   # phase of (b, c)
            const_spec((3, H2, H)),                                   # Fy  (re, im, re+im)
            const_spec((3, W, W2)),                                   # FxT
            const_spec((3, H, H2)),                                   # Gy
            const_spec((3, W2, W)),                                   # GxT
            pl.BlockSpec((1, 2, H2, W2), lambda c, b: (c, 0, 0, 0)),  # H of channel c
        ]
        out_specs = [pl.BlockSpec((1, 1, H, W), lambda c, b: (b, c, 0, 0)),
                     pl.BlockSpec((1, 1, H, W), lambda c, b: (b, c, 0, 0))]
        out_shape = [jax.ShapeDtypeStruct((B, C, H, W), jnp.float32),
                     jax.ShapeDtypeStruct((B, C, H, W), jnp.float32)]

        amp, phs = pl.pallas_call(
            _make_asm_kernel(cdt),
            grid=(C, B),                      # B innermost: channel's H stays resident
            in_specs=in_specs,
            out_specs=out_specs,
            out_shape=out_shape,
            compiler_params=pltpu.CompilerParams(
                dimension_semantics=("parallel", "parallel"),
                vmem_limit_bytes=_vmem_budget(H, W, np.dtype(cdt).itemsize)),
        )(ph, FY, FXT, GY, GXT, HC)

        return amp, phs


# ----------------------------- pure-JAX reference ----------------------------

def _reference(input_phase, wavelengths, feature_size, z):
    B, C, H, W = input_phase.shape
    H2, W2 = 2 * H, 2 * W
    u = jnp.exp(1j * input_phase.astype(jnp.float32))
    u = jnp.pad(u, ((0, 0), (0, 0),
                    (H // 2, H - H // 2), (W // 2, W - W // 2)))
    wls = wavelengths if len(wavelengths) == C else list(wavelengths) * C
    Hc = jnp.asarray(_transfer_function(wls, feature_size, z, H2, W2),
                     jnp.complex64)
    U1 = jnp.fft.fftn(jnp.fft.ifftshift(u, axes=(-2, -1)),
                      axes=(-2, -1), norm='ortho')
    U2 = Hc[None] * U1
    uo = jnp.fft.fftshift(jnp.fft.ifftn(U2, axes=(-2, -1), norm='ortho'),
                          axes=(-2, -1))
    uo = uo[..., H // 2:H // 2 + H, W // 2:W // 2 + W]
    return jnp.abs(uo), jnp.angle(uo)


# ------------------------------------ main -----------------------------------

if __name__ == "__main__":
    key = jax.random.PRNGKey(0)
    B, C, H, W = 2, 2, 16, 16
    wavelengths = [520e-9, 638e-9]        # one wavelength per channel
    feature_size = (6.4e-6, 6.4e-6)
    prop_dist = 0.05                      # float, like the module's float path

    input_phase = jax.random.uniform(key, (B, C, H, W), jnp.float32,
                                     minval=-np.pi, maxval=np.pi)

    # pure-JAX FFT reference (compare reconstructed complex fields to avoid
    # angle branch-cut issues)
    ref_amp, ref_phs = _reference(input_phase, wavelengths, feature_size,
                                  prop_dist)
    want = np.asarray(ref_amp) * np.exp(1j * np.asarray(ref_phs))

    # default path: bf16 MXU operands, f32 accumulation
    prop_bf16 = HoloPropagatorPallas(wavelengths, feature_size)
    amp, phs = prop_bf16(input_phase, prop_dist)
    jax.block_until_ready((amp, phs))
    got = np.asarray(amp) * np.exp(1j * np.asarray(phs))
    err_bf16 = float(np.max(np.abs(got - want)))
    assert err_bf16 < 5e-2, f"bf16 path max abs err = {err_bf16}"

    # reference-grade f32 operand path
    prop_f32 = HoloPropagatorPallas(wavelengths, feature_size,
                                    compute_dtype=jnp.float32)
    amp32, phs32 = prop_f32(input_phase, prop_dist)
    jax.block_until_ready((amp32, phs32))
    got32 = np.asarray(amp32) * np.exp(1j * np.asarray(phs32))
    err_f32 = float(np.max(np.abs(got32 - want)))
    assert err_f32 < 2e-3, f"f32 path max abs err = {err_f32}"

    print("KERNEL_OK")
</pallas_src>

<mosaic_0001>
module attributes {stable_mosaic.version = 11 : i64} {
  func.func @kernel(%arg0: i32, %arg1: i32, %arg2: memref<1x1x16x16xf32, #tpu.memory_space<vmem>>, %arg3: memref<3x32x16xbf16, #tpu.memory_space<vmem>>, %arg4: memref<3x16x32xbf16, #tpu.memory_space<vmem>>, %arg5: memref<3x16x32xbf16, #tpu.memory_space<vmem>>, %arg6: memref<3x32x16xbf16, #tpu.memory_space<vmem>>, %arg7: memref<1x2x32x32xbf16, #tpu.memory_space<vmem>>, %arg8: memref<1x1x16x16xf32, #tpu.memory_space<vmem>>, %arg9: memref<1x1x16x16xf32, #tpu.memory_space<vmem>>) attributes {dimension_semantics = [#tpu.dimension_semantics<parallel>, #tpu.dimension_semantics<parallel>], iteration_bounds = array<i64: 2, 2>, scalar_prefetch = 0 : i64, scratch_operands = 0 : i64, tpu.core_type = #tpu.core_type<tc>, window_params = [{transform_indices = @transform_0, window_bounds = array<i64: 1, 1, 16, 16>}, {pipeline_mode = #tpu.pipeline_mode<synchronous>, transform_indices = @transform_1, window_bounds = array<i64: 3, 32, 16>}, {pipeline_mode = #tpu.pipeline_mode<synchronous>, transform_indices = @transform_2, window_bounds = array<i64: 3, 16, 32>}, {pipeline_mode = #tpu.pipeline_mode<synchronous>, transform_indices = @transform_3, window_bounds = array<i64: 3, 16, 32>}, {pipeline_mode = #tpu.pipeline_mode<synchronous>, transform_indices = @transform_4, window_bounds = array<i64: 3, 32, 16>}, {transform_indices = @transform_5, window_bounds = array<i64: 1, 2, 32, 32>}, {transform_indices = @transform_6, window_bounds = array<i64: 1, 1, 16, 16>}, {transform_indices = @transform_7, window_bounds = array<i64: 1, 1, 16, 16>}]} {
    %c0 = arith.constant 0 : index
    %c0_0 = arith.constant 0 : index
    %c0_1 = arith.constant 0 : index
    %c0_2 = arith.constant 0 : index
    %0 = vector.load %arg2[%c0, %c0_0, %c0_1, %c0_2] : memref<1x1x16x16xf32, #tpu.memory_space<vmem>>, vector<1x1x16x16xf32>
    %1 = vector.shape_cast %0 : vector<1x1x16x16xf32> to vector<16x16xf32>
    %2 = math.cos %1 : vector<16x16xf32>
    %3 = arith.truncf %2 : vector<16x16xf32> to vector<16x16xbf16>
    %4 = math.sin %1 : vector<16x16xf32>
    %5 = arith.truncf %4 : vector<16x16xf32> to vector<16x16xbf16>
    %c0_3 = arith.constant 0 : index
    %c0_4 = arith.constant 0 : index
    %c0_5 = arith.constant 0 : index
    %6 = vector.load %arg3[%c0_3, %c0_4, %c0_5] : memref<3x32x16xbf16, #tpu.memory_space<vmem>>, vector<1x32x16xbf16>
    %7 = vector.shape_cast %6 : vector<1x32x16xbf16> to vector<32x16xbf16>
    %c1 = arith.constant 1 : index
    %c0_6 = arith.constant 0 : index
    %c0_7 = arith.constant 0 : index
    %8 = vector.load %arg3[%c1, %c0_6, %c0_7] : memref<3x32x16xbf16, #tpu.memory_space<vmem>>, vector<1x32x16xbf16>
    %9 = vector.shape_cast %8 : vector<1x32x16xbf16> to vector<32x16xbf16>
    %c2 = arith.constant 2 : index
    %c0_8 = arith.constant 0 : index
    %c0_9 = arith.constant 0 : index
    %10 = vector.load %arg3[%c2, %c0_8, %c0_9] : memref<3x32x16xbf16, #tpu.memory_space<vmem>>, vector<1x32x16xbf16>
    %11 = vector.shape_cast %10 : vector<1x32x16xbf16> to vector<32x16xbf16>
    %c0_10 = arith.constant 0 : index
    %c0_11 = arith.constant 0 : index
    %c0_12 = arith.constant 0 : index
    %12 = vector.load %arg4[%c0_10, %c0_11, %c0_12] : memref<3x16x32xbf16, #tpu.memory_space<vmem>>, vector<1x16x32xbf16>
    %13 = vector.shape_cast %12 : vector<1x16x32xbf16> to vector<16x32xbf16>
    %c1_13 = arith.constant 1 : index
    %c0_14 = arith.constant 0 : index
    %c0_15 = arith.constant 0 : index
    %14 = vector.load %arg4[%c1_13, %c0_14, %c0_15] : memref<3x16x32xbf16, #tpu.memory_space<vmem>>, vector<1x16x32xbf16>
    %15 = vector.shape_cast %14 : vector<1x16x32xbf16> to vector<16x32xbf16>
    %c2_16 = arith.constant 2 : index
    %c0_17 = arith.constant 0 : index
    %c0_18 = arith.constant 0 : index
    %16 = vector.load %arg4[%c2_16, %c0_17, %c0_18] : memref<3x16x32xbf16, #tpu.memory_space<vmem>>, vector<1x16x32xbf16>
    %17 = vector.shape_cast %16 : vector<1x16x32xbf16> to vector<16x32xbf16>
    %c0_19 = arith.constant 0 : index
    %c0_20 = arith.constant 0 : index
    %c0_21 = arith.constant 0 : index
    %18 = vector.load %arg5[%c0_19, %c0_20, %c0_21] : memref<3x16x32xbf16, #tpu.memory_space<vmem>>, vector<1x16x32xbf16>
    %19 = vector.shape_cast %18 : vector<1x16x32xbf16> to vector<16x32xbf16>
    %c1_22 = arith.constant 1 : index
    %c0_23 = arith.constant 0 : index
    %c0_24 = arith.constant 0 : index
    %20 = vector.load %arg5[%c1_22, %c0_23, %c0_24] : memref<3x16x32xbf16, #tpu.memory_space<vmem>>, vector<1x16x32xbf16>
    %21 = vector.shape_cast %20 : vector<1x16x32xbf16> to vector<16x32xbf16>
    %c2_25 = arith.constant 2 : index
    %c0_26 = arith.constant 0 : index
    %c0_27 = arith.constant 0 : index
    %22 = vector.load %arg5[%c2_25, %c0_26, %c0_27] : memref<3x16x32xbf16, #tpu.memory_space<vmem>>, vector<1x16x32xbf16>
    %23 = vector.shape_cast %22 : vector<1x16x32xbf16> to vector<16x32xbf16>
    %c0_28 = arith.constant 0 : index
    %c0_29 = arith.constant 0 : index
    %c0_30 = arith.constant 0 : index
    %24 = vector.load %arg6[%c0_28, %c0_29, %c0_30] : memref<3x32x16xbf16, #tpu.memory_space<vmem>>, vector<1x32x16xbf16>
    %25 = vector.shape_cast %24 : vector<1x32x16xbf16> to vector<32x16xbf16>
    %c1_31 = arith.constant 1 : index
    %c0_32 = arith.constant 0 : index
    %c0_33 = arith.constant 0 : index
    %26 = vector.load %arg6[%c1_31, %c0_32, %c0_33] : memref<3x32x16xbf16, #tpu.memory_space<vmem>>, vector<1x32x16xbf16>
    %27 = vector.shape_cast %26 : vector<1x32x16xbf16> to vector<32x16xbf16>
    %c2_34 = arith.constant 2 : index
    %c0_35 = arith.constant 0 : index
    %c0_36 = arith.constant 0 : index
    %28 = vector.load %arg6[%c2_34, %c0_35, %c0_36] : memref<3x32x16xbf16, #tpu.memory_space<vmem>>, vector<1x32x16xbf16>
    %29 = vector.shape_cast %28 : vector<1x32x16xbf16> to vector<32x16xbf16>
    %c0_37 = arith.constant 0 : index
    %c0_38 = arith.constant 0 : index
    %c0_39 = arith.constant 0 : index
    %c0_40 = arith.constant 0 : index
    %30 = vector.load %arg7[%c0_37, %c0_38, %c0_39, %c0_40] : memref<1x2x32x32xbf16, #tpu.memory_space<vmem>>, vector<1x1x32x32xbf16>
    %31 = vector.shape_cast %30 : vector<1x1x32x32xbf16> to vector<32x32xbf16>
    %32 = arith.extf %31 : vector<32x32xbf16> to vector<32x32xf32>
    %c0_41 = arith.constant 0 : index
    %c1_42 = arith.constant 1 : index
    %c0_43 = arith.constant 0 : index
    %c0_44 = arith.constant 0 : index
    %33 = vector.load %arg7[%c0_41, %c1_42, %c0_43, %c0_44] : memref<1x2x32x32xbf16, #tpu.memory_space<vmem>>, vector<1x1x32x32xbf16>
    %34 = vector.shape_cast %33 : vector<1x1x32x32xbf16> to vector<32x32xbf16>
    %35 = arith.extf %34 : vector<32x32xbf16> to vector<32x32xf32>
    %cst = arith.constant dense<0.000000e+00> : vector<32x16xf32>
    %36 = tpu.matmul %7, %3, %cst {dimension_numbers = #tpu.dot_dimension_numbers<[1], [0], [0], [1], [0, 0, 1, 1], [], []>} : vector<32x16xbf16>, vector<16x16xbf16>, vector<32x16xf32> -> vector<32x16xf32>
    %cst_45 = arith.constant dense<0.000000e+00> : vector<32x16xf32>
    %37 = tpu.matmul %9, %5, %cst_45 {dimension_numbers = #tpu.dot_dimension_numbers<[1], [0], [0], [1], [0, 0, 1, 1], [], []>} : vector<32x16xbf16>, vector<16x16xbf16>, vector<32x16xf32> -> vector<32x16xf32>
    %38 = arith.addf %3, %5 : vector<16x16xbf16>
    %cst_46 = arith.constant dense<0.000000e+00> : vector<32x16xf32>
    %39 = tpu.matmul %11, %38, %cst_46 {dimension_numbers = #tpu.dot_dimension_numbers<[1], [0], [0], [1], [0, 0, 1, 1], [], []>} : vector<32x16xbf16>, vector<16x16xbf16>, vector<32x16xf32> -> vector<32x16xf32>
    %40 = arith.subf %36, %37 : vector<32x16xf32>
    %41 = arith.subf %39, %36 : vector<32x16xf32>
    %42 = arith.subf %41, %37 : vector<32x16xf32>
    %43 = arith.truncf %40 : vector<32x16xf32> to vector<32x16xbf16>
    %44 = arith.truncf %42 : vector<32x16xf32> to vector<32x16xbf16>
    %cst_47 = arith.constant dense<0.000000e+00> : vector<32x32xf32>
    %45 = tpu.matmul %43, %13, %cst_47 {dimension_numbers = #tpu.dot_dimension_numbers<[1], [0], [0], [1], [0, 0, 1, 1], [], []>} : vector<32x16xbf16>, vector<16x32xbf16>, vector<32x32xf32> -> vector<32x32xf32>
    %cst_48 = arith.constant dense<0.000000e+00> : vector<32x32xf32>
    %46 = tpu.matmul %44, %15, %cst_48 {dimension_numbers = #tpu.dot_dimension_numbers<[1], [0], [0], [1], [0, 0, 1, 1], [], []>} : vector<32x16xbf16>, vector<16x32xbf16>, vector<32x32xf32> -> vector<32x32xf32>
    %47 = arith.addf %43, %44 : vector<32x16xbf16>
    %cst_49 = arith.constant dense<0.000000e+00> : vector<32x32xf32>
    %48 = tpu.matmul %47, %17, %cst_49 {dimension_numbers = #tpu.dot_dimension_numbers<[1], [0], [0], [1], [0, 0, 1, 1], [], []>} : vector<32x16xbf16>, vector<16x32xbf16>, vector<32x32xf32> -> vector<32x32xf32>
    %49 = arith.subf %45, %46 : vector<32x32xf32>
    %50 = arith.subf %48, %45 : vector<32x32xf32>
    %51 = arith.subf %50, %46 : vector<32x32xf32>
    %52 = arith.mulf %32, %49 : vector<32x32xf32>
    %53 = arith.mulf %35, %51 : vector<32x32xf32>
    %54 = arith.subf %52, %53 : vector<32x32xf32>
    %55 = arith.mulf %32, %51 : vector<32x32xf32>
    %56 = arith.mulf %35, %49 : vector<32x32xf32>
    %57 = arith.addf %55, %56 : vector<32x32xf32>
    %58 = arith.truncf %54 : vector<32x32xf32> to vector<32x32xbf16>
    %59 = arith.truncf %57 : vector<32x32xf32> to vector<32x32xbf16>
    %cst_50 = arith.constant dense<0.000000e+00> : vector<16x32xf32>
    %60 = tpu.matmul %19, %58, %cst_50 {dimension_numbers = #tpu.dot_dimension_numbers<[1], [0], [0], [1], [0, 0, 1, 1], [], []>} : vector<16x32xbf16>, vector<32x32xbf16>, vector<16x32xf32> -> vector<16x32xf32>
    %cst_51 = arith.constant dense<0.000000e+00> : vector<16x32xf32>
    %61 = tpu.matmul %21, %59, %cst_51 {dimension_numbers = #tpu.dot_dimension_numbers<[1], [0], [0], [1], [0, 0, 1, 1], [], []>} : vector<16x32xbf16>, vector<32x32xbf16>, vector<16x32xf32> -> vector<16x32xf32>
    %62 = arith.addf %58, %59 : vector<32x32xbf16>
    %cst_52 = arith.constant dense<0.000000e+00> : vector<16x32xf32>
    %63 = tpu.matmul %23, %62, %cst_52 {dimension_numbers = #tpu.dot_dimension_numbers<[1], [0], [0], [1], [0, 0, 1, 1], [], []>} : vector<16x32xbf16>, vector<32x32xbf16>, vector<16x32xf32> -> vector<16x32xf32>
    %64 = arith.subf %60, %61 : vector<16x32xf32>
    %65 = arith.subf %63, %60 : vector<16x32xf32>
    %66 = arith.subf %65, %61 : vector<16x32xf32>
    %67 = arith.truncf %64 : vector<16x32xf32> to vector<16x32xbf16>
    %68 = arith.truncf %66 : vector<16x32xf32> to vector<16x32xbf16>
    %cst_53 = arith.constant dense<0.000000e+00> : vector<16x16xf32>
    %69 = tpu.matmul %67, %25, %cst_53 {dimension_numbers = #tpu.dot_dimension_numbers<[1], [0], [0], [1], [0, 0, 1, 1], [], []>} : vector<16x32xbf16>, vector<32x16xbf16>, vector<16x16xf32> -> vector<16x16xf32>
    %cst_54 = arith.constant dense<0.000000e+00> : vector<16x16xf32>
    %70 = tpu.matmul %68, %27, %cst_54 {dimension_numbers = #tpu.dot_dimension_numbers<[1], [0], [0], [1], [0, 0, 1, 1], [], []>} : vector<16x32xbf16>, vector<32x16xbf16>, vector<16x16xf32> -> vector<16x16xf32>
    %71 = arith.addf %67, %68 : vector<16x32xbf16>
    %cst_55 = arith.constant dense<0.000000e+00> : vector<16x16xf32>
    %72 = tpu.matmul %71, %29, %cst_55 {dimension_numbers = #tpu.dot_dimension_numbers<[1], [0], [0], [1], [0, 0, 1, 1], [], []>} : vector<16x32xbf16>, vector<32x16xbf16>, vector<16x16xf32> -> vector<16x16xf32>
    %73 = arith.subf %69, %70 : vector<16x16xf32>
    %74 = arith.subf %72, %69 : vector<16x16xf32>
    %75 = arith.subf %74, %70 : vector<16x16xf32>
    %76 = arith.mulf %73, %73 : vector<16x16xf32>
    %77 = arith.mulf %75, %75 : vector<16x16xf32>
    %78 = arith.addf %76, %77 : vector<16x16xf32>
    %79 = math.sqrt %78 : vector<16x16xf32>
    %c0_56 = arith.constant 0 : index
    %c0_57 = arith.constant 0 : index
    %c0_58 = arith.constant 0 : index
    %c0_59 = arith.constant 0 : index
    %80 = vector.load %arg8[%c0_56, %c0_57, %c0_58, %c0_59] : memref<1x1x16x16xf32, #tpu.memory_space<vmem>>, vector<1x1x16x16xf32>
    %81 = vector.shape_cast %80 : vector<1x1x16x16xf32> to vector<16x16xf32>
    %82 = vector.shape_cast %79 : vector<16x16xf32> to vector<1x1x16x16xf32>
    tpu.vector_store %arg8[%c0_56, %c0_57, %c0_58, %c0_59], %82 {strides = array<i32>} : memref<1x1x16x16xf32, #tpu.memory_space<vmem>>, vector<1x1x16x16xf32>,
    %83 = math.atan2 %75, %73 : vector<16x16xf32>
    %c0_60 = arith.constant 0 : index
    %c0_61 = arith.constant 0 : index
    %c0_62 = arith.constant 0 : index
    %c0_63 = arith.constant 0 : index
    %84 = vector.load %arg9[%c0_60, %c0_61, %c0_62, %c0_63] : memref<1x1x16x16xf32, #tpu.memory_space<vmem>>, vector<1x1x16x16xf32>
    %85 = vector.shape_cast %84 : vector<1x1x16x16xf32> to vector<16x16xf32>
    %86 = vector.shape_cast %83 : vector<16x16xf32> to vector<1x1x16x16xf32>
    tpu.vector_store %arg9[%c0_60, %c0_61, %c0_62, %c0_63], %86 {strides = array<i32>} : memref<1x1x16x16xf32, #tpu.memory_space<vmem>>, vector<1x1x16x16xf32>,
    return
  }
  func.func @transform_0(%arg0: i32, %arg1: i32) -> (i32, i32, i32, i32) {
    %c0_i32 = arith.constant 0 : i32
    %c0_i32_0 = arith.constant 0 : i32
    %c0_i32_1 = arith.constant 0 : i32
    return %arg1, %arg0, %c0_i32, %c0_i32_0 : i32, i32, i32, i32
  }
  func.func @transform_1(%arg0: i32, %arg1: i32) -> (i32, i32, i32) {
    %c0_i32 = arith.constant 0 : i32
    %c0_i32_0 = arith.constant 0 : i32
    %c0_i32_1 = arith.constant 0 : i32
    %c0_i32_2 = arith.constant 0 : i32
    return %c0_i32, %c0_i32_0, %c0_i32_1 : i32, i32, i32
  }
  func.func @transform_2(%arg0: i32, %arg1: i32) -> (i32, i32, i32) {
    %c0_i32 = arith.constant 0 : i32
    %c0_i32_0 = arith.constant 0 : i32
    %c0_i32_1 = arith.constant 0 : i32
    %c0_i32_2 = arith.constant 0 : i32
    return %c0_i32, %c0_i32_0, %c0_i32_1 : i32, i32, i32
  }
  func.func @transform_3(%arg0: i32, %arg1: i32) -> (i32, i32, i32) {
    %c0_i32 = arith.constant 0 : i32
    %c0_i32_0 = arith.constant 0 : i32
    %c0_i32_1 = arith.constant 0 : i32
    %c0_i32_2 = arith.constant 0 : i32
    return %c0_i32, %c0_i32_0, %c0_i32_1 : i32, i32, i32
  }
  func.func @transform_4(%arg0: i32, %arg1: i32) -> (i32, i32, i32) {
    %c0_i32 = arith.constant 0 : i32
    %c0_i32_0 = arith.constant 0 : i32
    %c0_i32_1 = arith.constant 0 : i32
    %c0_i32_2 = arith.constant 0 : i32
    return %c0_i32, %c0_i32_0, %c0_i32_1 : i32, i32, i32
  }
  func.func @transform_5(%arg0: i32, %arg1: i32) -> (i32, i32, i32, i32) {
    %c0_i32 = arith.constant 0 : i32
    %c0_i32_0 = arith.constant 0 : i32
    %c0_i32_1 = arith.constant 0 : i32
    %c0_i32_2 = arith.constant 0 : i32
    return %arg0, %c0_i32, %c0_i32_0, %c0_i32_1 : i32, i32, i32, i32
  }
  func.func @transform_6(%arg0: i32, %arg1: i32) -> (i32, i32, i32, i32) {
    %c0_i32 = arith.constant 0 : i32
    %c0_i32_0 = arith.constant 0 : i32
    %c0_i32_1 = arith.constant 0 : i32
    return %arg1, %arg0, %c0_i32, %c0_i32_0 : i32, i32, i32, i32
  }
  func.func @transform_7(%arg0: i32, %arg1: i32) -> (i32, i32, i32, i32) {
    %c0_i32 = arith.constant 0 : i32
    %c0_i32_0 = arith.constant 0 : i32
    %c0_i32_1 = arith.constant 0 : i32
    return %arg1, %arg0, %c0_i32, %c0_i32_0 : i32, i32, i32, i32
  }
}

</mosaic_0001>

<llo_original>
// kernel: tpu_custom_call.1
$region0: #{tpu_custom_call.1}
  #allocation0 [shape = 'u32[]', space=smem, size = 0x4, offset = 0x4, fixed_abs, tag = 'smem constant byte address 0x4 - core index']
  #allocation1 [shape = 'u32[144,128]{1,0:T(1,128)}', space=vmem, size = 0x12000, scoped, tag = 'internal scratch']
  %s0 = inlined_call_operand.vmem [shape: f32[2,2,16,16], index: 0, kind: input, shape index: {}]
  %s1 = inlined_call_operand.vmem [shape: bf16[3,32,16], index: 1, kind: input, shape index: {}]
  %s2 = inlined_call_operand.hbm [shape: bf16[3,16,32], index: 2, kind: input, shape index: {}]
  %s3 = inlined_call_operand.vmem [shape: bf16[3,16,32], index: 3, kind: input, shape index: {}]
  %s4 = inlined_call_operand.vmem [shape: bf16[3,32,16], index: 4, kind: input, shape index: {}]
  %s5 = inlined_call_operand.vmem [shape: bf16[2,2,32,32], index: 5, kind: input, shape index: {}]
  %s6 = inlined_call_operand.hbm [shape: f32[2,2,16,16], index: 6, kind: output, shape index: {0}]
  %s7 = inlined_call_operand.hbm [shape: f32[2,2,16,16], index: 7, kind: output, shape index: {1}]
  %8 = xla_tuple %s6, %s7
  %s9 = sld [smem:[#allocation0]]
  $region69: #{tpu_custom_call.1} parent=0
    _
  %s11 = ssub.s32 1, %s9
  %s12 = scalar_select 0, %s11, %s9
  $region1: #{tpu_custom_call.1} parent=0
    #allocation2 [shape = 'u8[12288]{0}', space=vmem, size = 0x3000, scoped, tag = 'input window, operand 2, single buffered']
    #allocation3 [shape = 's32[2]{0}', space=sflag, size = 0x8, scoped, tag = 'scoped memory for tpu_custom_call.1']
    #allocation4 [shape = 's32[2]{0}', space=sflag, size = 0x8, scoped, tag = 'scoped memory for tpu_custom_call.1']
    #allocation5 [shape = 'u8[16384]{0}', space=vmem, size = 0x4000, scoped, tag = 'output window, operand 0']
    #allocation6 [shape = 'u8[16384]{0}', space=vmem, size = 0x4000, scoped, tag = 'output window, operand 1']
    #allocation7 [shape = 's32[2]{0}', space=sflag, size = 0x8, scoped, tag = 'scoped memory for tpu_custom_call.1']
    %13 = vsyncpa [#allocation3], 0
    %14 = vsyncpa [#allocation4], 0
    %s15 = scalar_lea.sflag [#allocation4], 1
    %16 = vsyncpa %s15, 0
    %17 = vsyncpa [#allocation7], 0
    %s18 = scalar_lea.sflag [#allocation7], 1
    %19 = vsyncpa %s18, 0
    loop: start=0, step=1, limit=6
    $region2: #{tpu_custom_call.1} parent=1 // loop_pre_header
      _
    $region3: #{tpu_custom_call.1} parent=1 // loop_header
      %s21 = sphi 0, %s25
      %p22 = scmp.ge.s32.totalorder %s21, 6
      %s28 = sphi 0, %s40
      %s29 = sphi 0, %s36
      %s30 = sphi 0, %s28
      %s31 = sphi 0, %s29
      %s32 = sphi 0, %s30
      %s33 = sphi 0, %s31
      %s45 = sphi 0, %s47
      %s48 = sphi 0, %s45
      %s49 = sphi 0, %s48
      %s65 = sphi 0, %s49
      %s69 = sphi 0, %s69
      %s71 = sphi 0, %s69
      %s72 = sphi 0, %s71
      %s86 = sphi 0, %s72
      %s90 = sphi 0, %s90
      %s92 = sphi 0, %s90
      %s93 = sphi 0, %s92
      %s107 = sphi 0, %s93
      %s111 = sphi 0, %s111
      %s113 = sphi 0, %s111
      %s114 = sphi 0, %s113
      %s128 = sphi 0, %s114
      %s132 = sphi 0, %s132
      %s134 = sphi 0, %s132
      %s135 = sphi 0, %s134
      %s149 = sphi 0, %s135
      %s155 = sphi 0, %s157
      %s158 = sphi 0, %s155
      %s159 = sphi 0, %s158
      %s175 = sphi 0, %s159
      %s183 = sphi 0, %s185
      %s186 = sphi 0, %s183
      %s187 = sphi 0, %s186
      %s203 = sphi 0, %s187
      %s211 = sphi 0, %s213
      %s214 = sphi 0, %s211
      %s215 = sphi 0, %s214
      %s231 = sphi 0, %s215
    $region4: #{tpu_custom_call.1} parent=1 // loop_header_branch
      %24 = sbr.rel (%p22) target = $region8
    $region5: #{tpu_custom_call.1} parent=1 // loop_body
      %s26 = ssub.s32 %s21, 1
      %s27 = ssub.s32 %s21, 2
      %s34 = sadd.s32 1, %s29
      %p35 = scmp.ge.s32.totalorder %s34, 2
      %s36 = scalar_select %p35, 0, %s34
      %s37 = sadd.s32 1, %s28
      %s38 = scalar_select %p35, %s37, %s28
      %p39 = scmp.ge.s32.totalorder %s38, 2
      %s40 = scalar_select %p39, 0, %s38
      %s41 = ssub.s32 %s29, %s36
      %s42 = ssub.s32 %s28, %s40
      %s43 = sor.u32 %s41, %s42
      %p44 = scmp.eq.s32.totalorder %s43, 0
      %s46 = sadd.s32 %s45, 1
      %s47 = scalar_select %p44, %s45, %s46
      %p50 = pneg %p44
      %p51 = scmp.eq.s32.totalorder %s21, 3
      %p52 = por %p50, %p51
      %p53 = scmp.ne.s32.totalorder %s45, %s48
      %p54 = scmp.eq.s32.totalorder %s21, 0
      %p55 = por %p53, %p54
      %p56 = scmp.ne.s32.totalorder %s45, %s48
      %p57 = scmp.eq.s32.totalorder %s26, 3
      %p58 = por %p56, %p57
      %p59 = scmp.ne.s32.totalorder %s48, %s49
      %p60 = scmp.eq.s32.totalorder %s26, 0
      %p61 = por %p59, %p60
      %p62 = scmp.ne.s32.totalorder %s48, %s49
      %p63 = scmp.eq.s32.totalorder %s27, 3
      %p64 = por %p62, %p63
      %p66 = scmp.ne.s32.totalorder %s49, %s65
      %p67 = scmp.eq.s32.totalorder %s27, 0
      %p68 = por %p66, %p67
      %s70 = sadd.s32 %s69, 1
      %p73 = scmp.eq.s32.totalorder %s21, 3
      %p74 = scmp.ne.s32.totalorder %s69, %s71
      %p75 = scmp.eq.s32.totalorder %s21, 0
      %p76 = por %p74, %p75
      %p77 = scmp.ne.s32.totalorder %s69, %s71
      %p78 = scmp.eq.s32.totalorder %s26, 3
      %p79 = por %p77, %p78
      %p80 = scmp.ne.s32.totalorder %s71, %s72
      %p81 = scmp.eq.s32.totalorder %s26, 0
      %p82 = por %p80, %p81
      %p83 = scmp.ne.s32.totalorder %s71, %s72
      %p84 = scmp.eq.s32.totalorder %s27, 3
      %p85 = por %p83, %p84
      %p87 = scmp.ne.s32.totalorder %s72, %s86
      %p88 = scmp.eq.s32.totalorder %s27, 0
      %p89 = por %p87, %p88
      %s91 = sadd.s32 %s90, 1
      %p94 = scmp.eq.s32.totalorder %s21, 3
      %p95 = scmp.ne.s32.totalorder %s90, %s92
      %p96 = scmp.eq.s32.totalorder %s21, 0
      %p97 = por %p95, %p96
      %p98 = scmp.ne.s32.totalorder %s90, %s92
      %p99 = scmp.eq.s32.totalorder %s26, 3
      %p100 = por %p98, %p99
      %p101 = scmp.ne.s32.totalorder %s92, %s93
      %p102 = scmp.eq.s32.totalorder %s26, 0
      %p103 = por %p101, %p102
      %p104 = scmp.ne.s32.totalorder %s92, %s93
      %p105 = scmp.eq.s32.totalorder %s27, 3
      %p106 = por %p104, %p105
      %p108 = scmp.ne.s32.totalorder %s93, %s107
      %p109 = scmp.eq.s32.totalorder %s27, 0
      %p110 = por %p108, %p109
      %s112 = sadd.s32 %s111, 1
      %p115 = scmp.eq.s32.totalorder %s21, 3
      %p116 = scmp.ne.s32.totalorder %s111, %s113
      %p117 = scmp.eq.s32.totalorder %s21, 0
      %p118 = por %p116, %p117
      %p119 = scmp.ne.s32.totalorder %s111, %s113
      %p120 = scmp.eq.s32.totalorder %s26, 3
      %p121 = por %p119, %p120
      %p122 = scmp.ne.s32.totalorder %s113, %s114
      %p123 = scmp.eq.s32.totalorder %s26, 0
      %p124 = por %p122, %p123
      %p125 = scmp.ne.s32.totalorder %s113, %s114
      %p126 = scmp.eq.s32.totalorder %s27, 3
      %p127 = por %p125, %p126
      %p129 = scmp.ne.s32.totalorder %s114, %s128
      %p130 = scmp.eq.s32.totalorder %s27, 0
      %p131 = por %p129, %p130
      %s133 = sadd.s32 %s132, 1
      %p136 = scmp.eq.s32.totalorder %s21, 3
      %p137 = scmp.ne.s32.totalorder %s132, %s134
      %p138 = scmp.eq.s32.totalorder %s21, 0
      %p139 = por %p137, %p138
      %p140 = scmp.ne.s32.totalorder %s132, %s134
      %p141 = scmp.eq.s32.totalorder %s26, 3
      %p142 = por %p140, %p141
      %p143 = scmp.ne.s32.totalorder %s134, %s135
      %p144 = scmp.eq.s32.totalorder %s26, 0
      %p145 = por %p143, %p144
      %p146 = scmp.ne.s32.totalorder %s134, %s135
      %p147 = scmp.eq.s32.totalorder %s27, 3
      %p148 = por %p146, %p147
      %p150 = scmp.ne.s32.totalorder %s135, %s149
      %p151 = scmp.eq.s32.totalorder %s27, 0
      %p152 = por %p150, %p151
      %s153 = ssub.s32 %s28, %s40
      %p154 = scmp.eq.s32.totalorder %s153, 0
      %s156 = sadd.s32 %s155, 1
      %s157 = scalar_select %p154, %s155, %s156
      %p160 = pneg %p154
      %p161 = scmp.eq.s32.totalorder %s21, 3
      %p162 = por %p160, %p161
      %p163 = scmp.ne.s32.totalorder %s155, %s158
      %p164 = scmp.eq.s32.totalorder %s21, 0
      %p165 = por %p163, %p164
      %p166 = scmp.ne.s32.totalorder %s155, %s158
      %p167 = scmp.eq.s32.totalorder %s26, 3
      %p168 = por %p166, %p167
      %p169 = scmp.ne.s32.totalorder %s158, %s159
      %p170 = scmp.eq.s32.totalorder %s26, 0
      %p171 = por %p169, %p170
      %p172 = scmp.ne.s32.totalorder %s158, %s159
      %p173 = scmp.eq.s32.totalorder %s27, 3
      %p174 = por %p172, %p173
      %p176 = scmp.ne.s32.totalorder %s159, %s175
      %p177 = scmp.eq.s32.totalorder %s27, 0
      %p178 = por %p176, %p177
      %s179 = ssub.s32 %s29, %s36
      %s180 = ssub.s32 %s28, %s40
      %s181 = sor.u32 %s179, %s180
      %p182 = scmp.eq.s32.totalorder %s181, 0
      %s184 = sadd.s32 %s183, 1
      %s185 = scalar_select %p182, %s183, %s184
      %p188 = pneg %p182
      %p189 = scmp.eq.s32.totalorder %s21, 3
      %p190 = por %p188, %p189
      %p191 = scmp.ne.s32.totalorder %s183, %s186
      %p192 = scmp.eq.s32.totalorder %s21, 0
      %p193 = por %p191, %p192
      %p194 = scmp.ne.s32.totalorder %s183, %s186
      %p195 = scmp.eq.s32.totalorder %s26, 3
      %p196 = por %p194, %p195
      %p197 = scmp.ne.s32.totalorder %s186, %s187
      %p198 = scmp.eq.s32.totalorder %s26, 0
      %p199 = por %p197, %p198
      %p200 = scmp.ne.s32.totalorder %s186, %s187
      %p201 = scmp.eq.s32.totalorder %s27, 3
      %p202 = por %p200, %p201
      %p204 = scmp.ne.s32.totalorder %s187, %s203
      %p205 = scmp.eq.s32.totalorder %s27, 0
      %p206 = por %p204, %p205
      %s207 = ssub.s32 %s29, %s36
      %s208 = ssub.s32 %s28, %s40
      %s209 = sor.u32 %s207, %s208
      %p210 = scmp.eq.s32.totalorder %s209, 0
      %s212 = sadd.s32 %s211, 1
      %s213 = scalar_select %p210, %s211, %s212
      %p216 = pneg %p210
      %p217 = scmp.eq.s32.totalorder %s21, 3
      %p218 = por %p216, %p217
      %p219 = scmp.ne.s32.totalorder %s211, %s214
      %p220 = scmp.eq.s32.totalorder %s21, 0
      %p221 = por %p219, %p220
      %p222 = scmp.ne.s32.totalorder %s211, %s214
      %p223 = scmp.eq.s32.totalorder %s26, 3
      %p224 = por %p222, %p223
      %p225 = scmp.ne.s32.totalorder %s214, %s215
      %p226 = scmp.eq.s32.totalorder %s26, 0
      %p227 = por %p225, %p226
      %p228 = scmp.ne.s32.totalorder %s214, %s215
      %p229 = scmp.eq.s32.totalorder %s27, 3
      %p230 = por %p228, %p229
      %p232 = scmp.ne.s32.totalorder %s215, %s231
      %p233 = scmp.eq.s32.totalorder %s27, 0
      %p234 = por %p232, %p233
      %p235 = scmp.le.s32.totalorder 1, %s21
      %p236 = scmp.lt.s32.totalorder %s21, 5
      %p237 = pnand %p235, %p236
      %p238 = pneg %p237
      // Predicated region
      $region9: #{tpu_custom_call.1} parent=5 // pred_check
        _
      $region10: #{tpu_custom_call.1} parent=5 // pred_check_branch
        %240 = sbr.rel (%p237) target = $region12
      $region11: #{tpu_custom_call.1} parent=5 // pred_region
        %s241 = ssub.s32 %s21, 1
        // Predicated region
        $region13: #{tpu_custom_call.1} parent=11 // pred_check
          %p242 = pneg %p82
        $region14: #{tpu_custom_call.1} parent=11 // pred_check_branch
          %244 = sbr.rel (%p242) target = $region16
        $region15: #{tpu_custom_call.1} parent=11 // pred_region
          _
        $region16: #{tpu_custom_call.1} parent=11 // pred_fallthru
          _
        // Predicated region
        $region17: #{tpu_custom_call.1} parent=11 // pred_check
          %p245 = pneg %p103
        $region18: #{tpu_custom_call.1} parent=11 // pred_check_branch
          %247 = sbr.rel (%p245) target = $region20
        $region19: #{tpu_custom_call.1} parent=11 // pred_region
          %s249 = ssub.s32 384, 384
          %250 = vsyncadd [#allocation3], %s249
          %s251 = sshll.u32 [#allocation2], 4
          %s252 = int_to_ptr.vmem [resolvable:$true] %s251
          %257 = dma.hbm_to_vmem [thread:$0]  %s2, 384, %s252, [#allocation3], 64, 64, 4
        $region20: #{tpu_custom_call.1} parent=11 // pred_fallthru
          _
        // Predicated region
        $region21: #{tpu_custom_call.1} parent=11 // pred_check
          %p258 = pneg %p124
        $region22: #{tpu_custom_call.1} parent=11 // pred_check_branch
          %260 = sbr.rel (%p258) target = $region24
        $region23: #{tpu_custom_call.1} parent=11 // pred_region
          _
        $region24: #{tpu_custom_call.1} parent=11 // pred_fallthru
          _
        // Predicated region
        $region25: #{tpu_custom_call.1} parent=11 // pred_check
          %p261 = pneg %p145
        $region26: #{tpu_custom_call.1} parent=11 // pred_check_branch
          %263 = sbr.rel (%p261) target = $region28
        $region27: #{tpu_custom_call.1} parent=11 // pred_region
          _
        $region28: #{tpu_custom_call.1} parent=11 // pred_fallthru
          _
      $region12: #{tpu_custom_call.1} parent=5 // pred_fallthru
        _
      %p264 = scmp.lt.s32.totalorder %s21, 4
      // Predicated region
      $region29: #{tpu_custom_call.1} parent=5 // pred_check
        %p265 = pneg %p264
      $region30: #{tpu_custom_call.1} parent=5 // pred_check_branch
        %267 = sbr.rel (%p265) target = $region32
      $region31: #{tpu_custom_call.1} parent=5 // pred_region
        // Predicated region
        $region33: #{tpu_custom_call.1} parent=31 // pred_check
          %p268 = pneg %p55
        $region34: #{tpu_custom_call.1} parent=31 // pred_check_branch
          %270 = sbr.rel (%p268) target = $region36
        $region35: #{tpu_custom_call.1} parent=31 // pred_region
          %p271 = scmp.lt.s32.totalorder %s29, 1
          %s272 = scalar_select %p271, %s29, 1
          %p273 = scmp.lt.s32.totalorder %s28, 1
          %s274 = scalar_select %p273, %s28, 1
          %s275 = smul.addr %s274, 2
          %s276 = smul.addr %s272, 4
          %s277 = sadd.s32 %s275, %s276
          %s278 = smul.addr %s277, 8
          %s279 = scalar_lea.vmem %s0, %s278
        $region36: #{tpu_custom_call.1} parent=31 // pred_fallthru
          _
        // Predicated region
        $region37: #{tpu_custom_call.1} parent=31 // pred_check
          %p280 = pneg %p165
        $region38: #{tpu_custom_call.1} parent=31 // pred_check_branch
          %282 = sbr.rel (%p280) target = $region40
        $region39: #{tpu_custom_call.1} parent=31 // pred_region
          %p283 = scmp.lt.s32.totalorder %s28, 1
          %s284 = scalar_select %p283, %s28, 1
          %s285 = smul.addr %s284, 8
          %s286 = smul.addr %s285, 4
          %s287 = scalar_lea.vmem %s5, %s286
        $region40: #{tpu_custom_call.1} parent=31 // pred_fallthru
          _
      $region32: #{tpu_custom_call.1} parent=5 // pred_fallthru
        _
      %p288 = scmp.le.s32.totalorder 1, %s21
      %p289 = scmp.lt.s32.totalorder %s21, 5
      %p290 = pnand %p288, %p289
      %p291 = pneg %p290
      // Predicated region
      $region41: #{tpu_custom_call.1} parent=5 // pred_check
        _
      $region42: #{tpu_custom_call.1} parent=5 // pred_check_branch
        %293 = sbr.rel (%p290) target = $region44
      $region43: #{tpu_custom_call.1} parent=5 // pred_region
        %s294 = ssub.s32 %s21, 1
        // Predicated region
        $region45: #{tpu_custom_call.1} parent=43 // pred_check
          %p295 = pneg %p103
        $region46: #{tpu_custom_call.1} parent=43 // pred_check_branch
          %297 = sbr.rel (%p295) target = $region48
        $region47: #{tpu_custom_call.1} parent=43 // pred_region
          %298 = dma.done [#allocation3], 384
        $region48: #{tpu_custom_call.1} parent=43 // pred_fallthru
          _
        %p299 = scmp.lt.s32.totalorder %s31, 1
        %s300 = scalar_select %p299, %s31, 1
        %p301 = scmp.lt.s32.totalorder %s30, 1
        %s302 = scalar_select %p301, %s30, 1
        %s303 = smul.addr %s302, 2
        %s304 = smul.addr %s300, 4
        %s305 = sadd.s32 %s303, %s304
        %s306 = smul.addr %s305, 8
        %s307 = scalar_lea.vmem %s0, %s306
        %p308 = pneg %p61
        %p309 = pneg %p58
        %p310 = pneg %p82
        %p311 = pneg %p79
        %p312 = pneg %p103
        %p313 = pneg %p100
        %p314 = pneg %p124
        %p315 = pneg %p121
        %p316 = pneg %p145
        %p317 = pneg %p142
        %p318 = scmp.lt.s32.totalorder %s30, 1
        %s319 = scalar_select %p318, %s30, 1
        %s320 = smul.addr %s319, 8
        %s321 = smul.addr %s320, 4
        %s322 = scalar_lea.vmem %s5, %s321
        %p323 = pneg %p171
        %p324 = pneg %p168
        %p325 = pneg %p199
        %p326 = pneg %p196
        %s327 = sand.u32 %s186, 1
        %s328 = scalar_lea.sflag [#allocation4], %s327
        %s329 = sand.u32 %s186, 1
        %s330 = smul.addr %s329, 16
        %s331 = scalar_lea.vmem [#allocation5], %s330
        %p332 = pneg %p227
        %p333 = pneg %p224
        %s334 = sand.u32 %s214, 1
        %s335 = scalar_lea.sflag [#allocation7], %s334
        %s336 = sand.u32 %s214, 1
        %s337 = smul.addr %s336, 16
        %s338 = scalar_lea.vmem [#allocation6], %s337
        %p339 = scmp.lt.s32.totalorder %s31, 1
        %s340 = scalar_select %p339, %s31, 1
        %p341 = scmp.lt.s32.totalorder %s30, 1
        %s342 = scalar_select %p341, %s30, 1
        %s343 = smul.addr %s342, 2
        %s344 = smul.addr %s340, 4
        %s345 = sadd.s32 %s343, %s344
        %s346 = smul.addr %s345, 8
        %s347 = scalar_lea.vmem %s0, %s346
        %p348 = scmp.lt.s32.totalorder %s30, 1
        %s349 = scalar_select %p348, %s30, 1
        %s350 = smul.addr %s349, 8
        %s351 = smul.addr %s350, 4
        %s352 = scalar_lea.vmem %s5, %s351
        %v354 = vld [vmem:[%s347] sm:$0xff]
        %v355 = vld [vmem:[%s347 + $0x8] sm:$0xff]
        %v356 = vand.u32 2147483647, %v354
        %vm357 = vcmp.le.f32.partialorder %v356, 0.7853982
        %vm358 = vcmp.lt.s32.totalorder %v354, 0
        %v359 = vand.u32 %v354, 2139095040
        %v360 = vshrl.u32 %v359, 23
        %v361 = vsub.s32 %v360, 127
        %v362 = vand.u32 2147483647, %v354
        %v363 = vand.u32 %v362, 8388607
        %v364 = vor.u32 %v363, 8388608
        %v365 = vsub.s32 0, %v364
        %v366 = vadd.s32 %v361, 1
        %vm367 = vcmp.gt.s32.totalorder %v366, 0
        %v368 = vsel %vm367, %v366, 0
        %v369 = vshrl.u32 %v368, 5
        %v370 = vand.u32 %v368, 31
        %v371 = vsub.s32 32, %v370
        %v372 = vshrl.u32 683565275, %v371
        %v373 = vshll.u32 683565275, %v370
        %v374 = vshrl.u32 2475754826, %v371
        %v375 = vor.u32 %v373, %v374
        %v376 = vshll.u32 2475754826, %v370
        %v377 = vshrl.u32 2131351028, %v371
        %v378 = vor.u32 %v376, %v377
        %v379 = vshll.u32 2131351028, %v370
        %v380 = vshrl.u32 2102212464, %v371
        %v381 = vor.u32 %v379, %v380
        %v382 = vshll.u32 2102212464, %v370
        %v383 = vshrl.u32 920167782, %v371
        %v384 = vor.u32 %v382, %v383
        %v385 = vshll.u32 920167782, %v370
        %v386 = vshrl.u32 1326507024, %v371
        %v387 = vor.u32 %v385, %v386
        %vm388 = vcmp.lt.s32.totalorder %v369, 1
        %vm389 = vcmp.lt.s32.totalorder %v369, 2
        %vm390 = vcmp.lt.s32.totalorder %v369, 3
        %vm391 = vcmp.lt.s32.totalorder %v369, 4
        %v392 = vsel %vm388, %v372, %v375
        %v393 = vsel %vm391, %v381, 2102212464
        %v394 = vsel %vm390, %v378, %v393
        %v395 = vsel %vm389, %v392, %v394
        %v396 = vsel %vm388, %v375, %v378
        %v397 = vsel %vm391, %v384, 920167782
        %v398 = vsel %vm390, %v381, %v397
        %v399 = vsel %vm389, %v396, %v398
        %v400 = vsel %vm388, %v378, %v381
        %v401 = vsel %vm391, %v387, 1326507024
        %v402 = vsel %vm390, %v384, %v401
        %v403 = vsel %vm389, %v400, %v402
        %v404 = vshll.u32 %v364, 8
        %v405 = vmul.u32.u64.compose %v404, %v403
        %v406 = vextract.low.u32 %v405
        %v407 = vextract.high.u32 %v405
        %v408 = vmul.u32.u64.compose %v404, %v399
        %v409 = vextract.low.u32 %v408
        %v410 = vextract.high.u32 %v408
        %v411 = vmul.u32 %v404, %v395
        %v412 = vadd.s32 %v407, %v409
        %vm413 = vc.u32 %v407, %v409
        %v414 = vadd.s32 %v410, 1
        %v415 = vsel %vm413, %v414, %v410
        %v416 = vadd.s32 %v411, %v415
        %v417 = vadd.s32 %v416, 536870912
        %v418 = vshrl.u32 %v417, 30
        %v419 = vshll.u32 %v418, 30
        %v420 = vsub.s32 %v416, %v419
        %vm421 = vcmp.lt.s32.totalorder %v420, 0
        %v422 = vsub.s32 0, %v420
        %v423 = vsel %vm421, %v422, %v420
        %v424 = vclz %v423
        %v425 = vsub.s32 %v424, 2
        %vm426 = vcmp.gt.s32.totalorder 0, %v425
        %v427 = vsel %vm426, 0, %v425
        %v428 = vsub.s32 32, %v427
        %v429 = vshll.u32 %v420, %v427
        %v430 = vshrl.u32 %v412, %v428
        %v431 = vor.u32 %v429, %v430
        %v432 = vsub.s32 4294967266, %v427
        %v433 = vadd.s32 %v432, 127
        %v434 = vshll.u32 %v433, 23
        %v435 = vor.u32 4788187, %v434
        %v436 = vand.u32 2147483647, %v435
        %v438 = vcvt.s32.f32 %v431
        %v439 = vmul.f32 %v438, %v436
        %v440 = vxor.u32 %v439, 2147483648
        %v441 = vsel %vm358, %v440, %v439
        %v442 = vsub.s32 4, %v418
        %v443 = vsel %vm358, %v442, %v418
        %v444 = vsel %vm357, %v354, %v441
        %v445 = vsel %vm357, 0, %v443
        %v446 = vcosq.f32.pop %v444
        %v447 = vsinq.f32.pop %v444
        %vm448 = vweird.f32 %v354
        %v449 = vand.u32 %v445, 3
        %vm450 = vcmp.lt.s32.totalorder %v449, 2
        %vm451 = vcmp.eq.s32.totalorder %v449, 0
        %v452 = vxor.u32 %v447, 2147483648
        %v453 = vsel %vm451, %v446, %v452
        %vm454 = vcmp.eq.s32.totalorder %v449, 2
        %v455 = vxor.u32 %v446, 2147483648
        %v456 = vsel %vm454, %v455, %v447
        %v457 = vsel %vm450, %v453, %v456
        %v458 = vsel %vm448, nan, %v457
        %v459 = vand.u32 2147483647, %v355
        %vm460 = vcmp.le.f32.partialorder %v459, 0.7853982
        %vm461 = vcmp.lt.s32.totalorder %v355, 0
        %v462 = vand.u32 %v355, 2139095040
        %v463 = vshrl.u32 %v462, 23
        %v464 = vsub.s32 %v463, 127
        %v465 = vand.u32 2147483647, %v355
        %v466 = vand.u32 %v465, 8388607
        %v467 = vor.u32 %v466, 8388608
        %v468 = vsub.s32 0, %v467
        %v469 = vadd.s32 %v464, 1
        %vm470 = vcmp.gt.s32.totalorder %v469, 0
        %v471 = vsel %vm470, %v469, 0
        %v472 = vshrl.u32 %v471, 5
        %v473 = vand.u32 %v471, 31
        %v474 = vsub.s32 32, %v473
        %v475 = vshrl.u32 683565275, %v474
        %v476 = vshll.u32 683565275, %v473
        %v477 = vshrl.u32 2475754826, %v474
        %v478 = vor.u32 %v476, %v477
        %v479 = vshll.u32 2475754826, %v473
        %v480 = vshrl.u32 2131351028, %v474
        %v481 = vor.u32 %v479, %v480
        %v482 = vshll.u32 2131351028, %v473
        %v483 = vshrl.u32 2102212464, %v474
        %v484 = vor.u32 %v482, %v483
        %v485 = vshll.u32 2102212464, %v473
        %v486 = vshrl.u32 920167782, %v474
        %v487 = vor.u32 %v485, %v486
        %v488 = vshll.u32 920167782, %v473
        %v489 = vshrl.u32 1326507024, %v474
        %v490 = vor.u32 %v488, %v489
        %vm491 = vcmp.lt.s32.totalorder %v472, 1
        %vm492 = vcmp.lt.s32.totalorder %v472, 2
        %vm493 = vcmp.lt.s32.totalorder %v472, 3
        %vm494 = vcmp.lt.s32.totalorder %v472, 4
        %v495 = vsel %vm491, %v475, %v478
        %v496 = vsel %vm494, %v484, 2102212464
        %v497 = vsel %vm493, %v481, %v496
        %v498 = vsel %vm492, %v495, %v497
        %v499 = vsel %vm491, %v478, %v481
        %v500 = vsel %vm494, %v487, 920167782
        %v501 = vsel %vm493, %v484, %v500
        %v502 = vsel %vm492, %v499, %v501
        %v503 = vsel %vm491, %v481, %v484
        %v504 = vsel %vm494, %v490, 1326507024
        %v505 = vsel %vm493, %v487, %v504
        %v506 = vsel %vm492, %v503, %v505
        %v507 = vshll.u32 %v467, 8
        %v508 = vmul.u32.u64.compose %v507, %v506
        %v509 = vextract.low.u32 %v508
        %v510 = vextract.high.u32 %v508
        %v511 = vmul.u32.u64.compose %v507, %v502
        %v512 = vextract.low.u32 %v511
        %v513 = vextract.high.u32 %v511
        %v514 = vmul.u32 %v507, %v498
        %v515 = vadd.s32 %v510, %v512
        %vm516 = vc.u32 %v510, %v512
        %v517 = vadd.s32 %v513, 1
        %v518 = vsel %vm516, %v517, %v513
        %v519 = vadd.s32 %v514, %v518
        %v520 = vadd.s32 %v519, 536870912
        %v521 = vshrl.u32 %v520, 30
        %v522 = vshll.u32 %v521, 30
        %v523 = vsub.s32 %v519, %v522
        %vm524 = vcmp.lt.s32.totalorder %v523, 0
        %v525 = vsub.s32 0, %v523
        %v526 = vsel %vm524, %v525, %v523
        %v527 = vclz %v526
        %v528 = vsub.s32 %v527, 2
        %vm529 = vcmp.gt.s32.totalorder 0, %v528
        %v530 = vsel %vm529, 0, %v528
        %v531 = vsub.s32 32, %v530
        %v532 = vshll.u32 %v523, %v530
        %v533 = vshrl.u32 %v515, %v531
        %v534 = vor.u32 %v532, %v533
        %v535 = vsub.s32 4294967266, %v530
        %v536 = vadd.s32 %v535, 127
        %v537 = vshll.u32 %v536, 23
        %v538 = vor.u32 4788187, %v537
        %v539 = vand.u32 2147483647, %v538
        %v541 = vcvt.s32.f32 %v534
        %v542 = vmul.f32 %v541, %v539
        %v543 = vxor.u32 %v542, 2147483648
        %v544 = vsel %vm461, %v543, %v542
        %v545 = vsub.s32 4, %v521
        %v546 = vsel %vm461, %v545, %v521
        %v547 = vsel %vm460, %v355, %v544
        %v548 = vsel %vm460, 0, %v546
        %v549 = vcosq.f32.pop %v547
        %v550 = vsinq.f32.pop %v547
        %vm551 = vweird.f32 %v355
        %v552 = vand.u32 %v548, 3
        %vm553 = vcmp.lt.s32.totalorder %v552, 2
        %vm554 = vcmp.eq.s32.totalorder %v552, 0
        %v555 = vxor.u32 %v550, 2147483648
        %v556 = vsel %vm554, %v549, %v555
        %vm557 = vcmp.eq.s32.totalorder %v552, 2
        %v558 = vxor.u32 %v549, 2147483648
        %v559 = vsel %vm557, %v558, %v550
        %v560 = vsel %vm553, %v556, %v559
        %v561 = vsel %vm551, nan, %v560
        %v562 = vpack.c.bf16 %v561, %v458
        %v563 = vand.u32 2147483647, %v354
        %vm564 = vcmp.le.f32.partialorder %v563, 0.7853982
        %vm565 = vcmp.lt.s32.totalorder %v354, 0
        %v566 = vand.u32 %v354, 2139095040
        %v567 = vshrl.u32 %v566, 23
        %v568 = vsub.s32 %v567, 127
        %v569 = vand.u32 2147483647, %v354
        %v570 = vand.u32 %v569, 8388607
        %v571 = vor.u32 %v570, 8388608
        %v572 = vsub.s32 0, %v571
        %v573 = vadd.s32 %v568, 1
        %vm574 = vcmp.gt.s32.totalorder %v573, 0
        %v575 = vsel %vm574, %v573, 0
        %v576 = vshrl.u32 %v575, 5
        %v577 = vand.u32 %v575, 31
        %v578 = vsub.s32 32, %v577
        %v579 = vshrl.u32 683565275, %v578
        %v580 = vshll.u32 683565275, %v577
        %v581 = vshrl.u32 2475754826, %v578
        %v582 = vor.u32 %v580, %v581
        %v583 = vshll.u32 2475754826, %v577
        %v584 = vshrl.u32 2131351028, %v578
        %v585 = vor.u32 %v583, %v584
        %v586 = vshll.u32 2131351028, %v577
        %v587 = vshrl.u32 2102212464, %v578
        %v588 = vor.u32 %v586, %v587
        %v589 = vshll.u32 2102212464, %v577
        %v590 = vshrl.u32 920167782, %v578
        %v591 = vor.u32 %v589, %v590
        %v592 = vshll.u32 920167782, %v577
        %v593 = vshrl.u32 1326507024, %v578
        %v594 = vor.u32 %v592, %v593
        %vm595 = vcmp.lt.s32.totalorder %v576, 1
        %vm596 = vcmp.lt.s32.totalorder %v576, 2
        %vm597 = vcmp.lt.s32.totalorder %v576, 3
        %vm598 = vcmp.lt.s32.totalorder %v576, 4
        %v599 = vsel %vm595, %v579, %v582
        %v600 = vsel %vm598, %v588, 2102212464
        %v601 = vsel %vm597, %v585, %v600
        %v602 = vsel %vm596, %v599, %v601
        %v603 = vsel %vm595, %v582, %v585
        %v604 = vsel %vm598, %v591, 920167782
        %v605 = vsel %vm597, %v588, %v604
        %v606 = vsel %vm596, %v603, %v605
        %v607 = vsel %vm595, %v585, %v588
        %v608 = vsel %vm598, %v594, 1326507024
        %v609 = vsel %vm597, %v591, %v608
        %v610 = vsel %vm596, %v607, %v609
        %v611 = vshll.u32 %v571, 8
        %v612 = vmul.u32.u64.compose %v611, %v610
        %v613 = vextract.low.u32 %v612
        %v614 = vextract.high.u32 %v612
        %v615 = vmul.u32.u64.compose %v611, %v606
        %v616 = vextract.low.u32 %v615
        %v617 = vextract.high.u32 %v615
        %v618 = vmul.u32 %v611, %v602
        %v619 = vadd.s32 %v614, %v616
        %vm620 = vc.u32 %v614, %v616
        %v621 = vadd.s32 %v617, 1
        %v622 = vsel %vm620, %v621, %v617
        %v623 = vadd.s32 %v618, %v622
        %v624 = vadd.s32 %v623, 536870912
        %v625 = vshrl.u32 %v624, 30
        %v626 = vshll.u32 %v625, 30
        %v627 = vsub.s32 %v623, %v626
        %vm628 = vcmp.lt.s32.totalorder %v627, 0
        %v629 = vsub.s32 0, %v627
        %v630 = vsel %vm628, %v629, %v627
        %v631 = vclz %v630
        %v632 = vsub.s32 %v631, 2
        %vm633 = vcmp.gt.s32.totalorder 0, %v632
        %v634 = vsel %vm633, 0, %v632
        %v635 = vsub.s32 32, %v634
        %v636 = vshll.u32 %v627, %v634
        %v637 = vshrl.u32 %v619, %v635
        %v638 = vor.u32 %v636, %v637
        %v639 = vsub.s32 4294967266, %v634
        %v640 = vadd.s32 %v639, 127
        %v641 = vshll.u32 %v640, 23
        %v642 = vor.u32 4788187, %v641
        %v643 = vand.u32 2147483647, %v642
        %v645 = vcvt.s32.f32 %v638
        %v646 = vmul.f32 %v645, %v643
        %v647 = vxor.u32 %v646, 2147483648
        %v648 = vsel %vm565, %v647, %v646
        %v649 = vsub.s32 4, %v625
        %v650 = vsel %vm565, %v649, %v625
        %v651 = vsel %vm564, %v354, %v648
        %v652 = vsel %vm564, 0, %v650
        %v653 = vcosq.f32.pop %v651
        %v654 = vsinq.f32.pop %v651
        %vm655 = vweird.f32 %v354
        %v656 = vadd.s32 %v652, 3
        %v657 = vand.u32 %v656, 3
        %vm658 = vcmp.lt.s32.totalorder %v657, 2
        %vm659 = vcmp.eq.s32.totalorder %v657, 0
        %v660 = vxor.u32 %v654, 2147483648
        %v661 = vsel %vm659, %v653, %v660
        %vm662 = vcmp.eq.s32.totalorder %v657, 2
        %v663 = vxor.u32 %v653, 2147483648
        %v664 = vsel %vm662, %v663, %v654
        %v665 = vsel %vm658, %v661, %v664
        %v666 = vsel %vm655, nan, %v665
        %v667 = vand.u32 2147483647, %v355
        %vm668 = vcmp.le.f32.partialorder %v667, 0.7853982
        %vm669 = vcmp.lt.s32.totalorder %v355, 0
        %v670 = vand.u32 %v355, 2139095040
        %v671 = vshrl.u32 %v670, 23
        %v672 = vsub.s32 %v671, 127
        %v673 = vand.u32 2147483647, %v355
        %v674 = vand.u32 %v673, 8388607
        %v675 = vor.u32 %v674, 8388608
        %v676 = vsub.s32 0, %v675
        %v677 = vadd.s32 %v672, 1
        %vm678 = vcmp.gt.s32.totalorder %v677, 0
        %v679 = vsel %vm678, %v677, 0
        %v680 = vshrl.u32 %v679, 5
        %v681 = vand.u32 %v679, 31
        %v682 = vsub.s32 32, %v681
        %v683 = vshrl.u32 683565275, %v682
        %v684 = vshll.u32 683565275, %v681
        %v685 = vshrl.u32 2475754826, %v682
        %v686 = vor.u32 %v684, %v685
        %v687 = vshll.u32 2475754826, %v681
        %v688 = vshrl.u32 2131351028, %v682
        %v689 = vor.u32 %v687, %v688
        %v690 = vshll.u32 2131351028, %v681
        %v691 = vshrl.u32 2102212464, %v682
        %v692 = vor.u32 %v690, %v691
        %v693 = vshll.u32 2102212464, %v681
        %v694 = vshrl.u32 920167782, %v682
        %v695 = vor.u32 %v693, %v694
        %v696 = vshll.u32 920167782, %v681
        %v697 = vshrl.u32 1326507024, %v682
        %v698 = vor.u32 %v696, %v697
        %vm699 = vcmp.lt.s32.totalorder %v680, 1
        %vm700 = vcmp.lt.s32.totalorder %v680, 2
        %vm701 = vcmp.lt.s32.totalorder %v680, 3
        %vm702 = vcmp.lt.s32.totalorder %v680, 4
        %v703 = vsel %vm699, %v683, %v686
        %v704 = vsel %vm702, %v692, 2102212464
        %v705 = vsel %vm701, %v689, %v704
        %v706 = vsel %vm700, %v703, %v705
        %v707 = vsel %vm699, %v686, %v689
        %v708 = vsel %vm702, %v695, 920167782
        %v709 = vsel %vm701, %v692, %v708
        %v710 = vsel %vm700, %v707, %v709
        %v711 = vsel %vm699, %v689, %v692
        %v712 = vsel %vm702, %v698, 1326507024
        %v713 = vsel %vm701, %v695, %v712
        %v714 = vsel %vm700, %v711, %v713
        %v715 = vshll.u32 %v675, 8
        %v716 = vmul.u32.u64.compose %v715, %v714
        %v717 = vextract.low.u32 %v716
        %v718 = vextract.high.u32 %v716
        %v719 = vmul.u32.u64.compose %v715, %v710
        %v720 = vextract.low.u32 %v719
        %v721 = vextract.high.u32 %v719
        %v722 = vmul.u32 %v715, %v706
        %v723 = vadd.s32 %v718, %v720
        %vm724 = vc.u32 %v718, %v720
        %v725 = vadd.s32 %v721, 1
        %v726 = vsel %vm724, %v725, %v721
        %v727 = vadd.s32 %v722, %v726
        %v728 = vadd.s32 %v727, 536870912
        %v729 = vshrl.u32 %v728, 30
        %v730 = vshll.u32 %v729, 30
        %v731 = vsub.s32 %v727, %v730
        %vm732 = vcmp.lt.s32.totalorder %v731, 0
        %v733 = vsub.s32 0, %v731
        %v734 = vsel %vm732, %v733, %v731
        %v735 = vclz %v734
        %v736 = vsub.s32 %v735, 2
        %vm737 = vcmp.gt.s32.totalorder 0, %v736
        %v738 = vsel %vm737, 0, %v736
        %v739 = vsub.s32 32, %v738
        %v740 = vshll.u32 %v731, %v738
        %v741 = vshrl.u32 %v723, %v739
        %v742 = vor.u32 %v740, %v741
        %v743 = vsub.s32 4294967266, %v738
        %v744 = vadd.s32 %v743, 127
        %v745 = vshll.u32 %v744, 23
        %v746 = vor.u32 4788187, %v745
        %v747 = vand.u32 2147483647, %v746
        %v749 = vcvt.s32.f32 %v742
        %v750 = vmul.f32 %v749, %v747
        %v751 = vxor.u32 %v750, 2147483648
        %v752 = vsel %vm669, %v751, %v750
        %v753 = vsub.s32 4, %v729
        %v754 = vsel %vm669, %v753, %v729
        %v755 = vsel %vm668, %v355, %v752
        %v756 = vsel %vm668, 0, %v754
        %v757 = vcosq.f32.pop %v755
        %v758 = vsinq.f32.pop %v755
        %vm759 = vweird.f32 %v355
        %v760 = vadd.s32 %v756, 3
        %v761 = vand.u32 %v760, 3
        %vm762 = vcmp.lt.s32.totalorder %v761, 2
        %vm763 = vcmp.eq.s32.totalorder %v761, 0
        %v764 = vxor.u32 %v758, 2147483648
        %v765 = vsel %vm763, %v757, %v764
        %vm766 = vcmp.eq.s32.totalorder %v761, 2
        %v767 = vxor.u32 %v757, 2147483648
        %v768 = vsel %vm766, %v767, %v758
        %v769 = vsel %vm762, %v765, %v768
        %v770 = vsel %vm759, nan, %v769
        %v771 = vpack.c.bf16 %v770, %v666
        %v772 = vld [vmem:[%s1] sm:$0xf]
        %v773 = vld [vmem:[%s1 + $0x4] sm:$0xf]
        %v774 = vld [vmem:[%s1 + $0x8] sm:$0xf]
        %v775 = vld [vmem:[%s1 + $0xc] sm:$0xf]
        %s776 = scalar_lea.vmem %s1, 16
        %v777 = vld [vmem:[%s776] sm:$0xf]
        %v778 = vld [vmem:[%s776 + $0x4] sm:$0xf]
        %v779 = vld [vmem:[%s776 + $0x8] sm:$0xf]
        %v780 = vld [vmem:[%s776 + $0xc] sm:$0xf]
        %s781 = scalar_lea.vmem %s1, 32
        %v782 = vld [vmem:[%s781] sm:$0xf]
        %v783 = vld [vmem:[%s781 + $0x4] sm:$0xf]
        %v784 = vld [vmem:[%s781 + $0x8] sm:$0xf]
        %v785 = vld [vmem:[%s781 + $0xc] sm:$0xf]
        %v786 = vld [vmem:[#allocation2] sm:$0xf]
        %v787 = vld [vmem:[#allocation2 + $0x4] sm:$0xf]
        %s788 = scalar_lea.vmem [#allocation2], 8
        %v789 = vld [vmem:[%s788] sm:$0xf]
        %v790 = vld [vmem:[%s788 + $0x4] sm:$0xf]
        %s791 = scalar_lea.vmem [#allocation2], 16
        %v792 = vld [vmem:[%s791] sm:$0xf]
        %v793 = vld [vmem:[%s791 + $0x4] sm:$0xf]
        %v794 = vld [vmem:[%s3] sm:$0xf]
        %v795 = vld [vmem:[%s3 + $0x4] sm:$0xf]
        %s796 = scalar_lea.vmem %s3, 8
        %v797 = vld [vmem:[%s796] sm:$0xf]
        %v798 = vld [vmem:[%s796 + $0x4] sm:$0xf]
        %s799 = scalar_lea.vmem %s3, 16
        %v800 = vld [vmem:[%s799] sm:$0xf]
        %v801 = vld [vmem:[%s799 + $0x4] sm:$0xf]
        %v802 = vld [vmem:[%s4] sm:$0xf]
        %v803 = vld [vmem:[%s4 + $0x4] sm:$0xf]
        %v804 = vld [vmem:[%s4 + $0x8] sm:$0xf]
        %v805 = vld [vmem:[%s4 + $0xc] sm:$0xf]
        %s806 = scalar_lea.vmem %s4, 16
        %v807 = vld [vmem:[%s806] sm:$0xf]
        %v808 = vld [vmem:[%s806 + $0x4] sm:$0xf]
        %v809 = vld [vmem:[%s806 + $0x8] sm:$0xf]
        %v810 = vld [vmem:[%s806 + $0xc] sm:$0xf]
        %s811 = scalar_lea.vmem %s4, 32
        %v812 = vld [vmem:[%s811] sm:$0xf]
        %v813 = vld [vmem:[%s811 + $0x4] sm:$0xf]
        %v814 = vld [vmem:[%s811 + $0x8] sm:$0xf]
        %v815 = vld [vmem:[%s811 + $0xc] sm:$0xf]
        %v816 = vld [vmem:[%s352] sm:$0xf]
        %v817 = vld [vmem:[%s352 + $0x4] sm:$0xf]
        %v818 = vld [vmem:[%s352 + $0x8] sm:$0xf]
        %v819 = vld [vmem:[%s352 + $0xc] sm:$0xf]
        %v820 = vunpack.c.l.bf16 %v816
        %v821 = vunpack.c.l.bf16 %v817
        %v822 = vunpack.c.l.bf16 %v818
        %v823 = vunpack.c.l.bf16 %v819
        %s824 = scalar_lea.vmem %s352, 16
        %v825 = vld [vmem:[%s824] sm:$0xf]
        %v826 = vld [vmem:[%s824 + $0x4] sm:$0xf]
        %v827 = vld [vmem:[%s824 + $0x8] sm:$0xf]
        %v828 = vld [vmem:[%s824 + $0xc] sm:$0xf]
        %v829 = vunpack.c.l.bf16 %v825
        %v830 = vunpack.c.l.bf16 %v826
        %v831 = vunpack.c.l.bf16 %v827
        %v832 = vunpack.c.l.bf16 %v828
        %v837 = vunpack.c.l.b16 %v772
        %v838 = vunpack.c.l.b16 %v773
        %v839 = vunpack.c.l.b16 %v774
        %v840 = vunpack.c.l.b16 %v775
        %v841 = vpack.c.b16 %v838, %v837
        %v842 = vpack.c.b16 %v840, %v839
        %vm843 = vcmask 130048
        %v845 = vsel %vm843, %v841, 0
        %v848 = vsel %vm843, %v842, 0
        %850 = vmatprep.subr.bf16.mxu0 0
        %851 = vmatpush1.bf16.msra.mxu0 %v562
        %852 = vmatprep.subr.bf16.mxu0 0
        %853 = vmatpush1.bf16.msra.mxu0 0
        %854 = vmatprep.subr.bf16.mxu0 0
        %855 = vmatpush1.bf16.msra.mxu0 0
        %856 = vmatprep.subr.bf16.mxu0 0
        %857 = vmatpush1.bf16.msra.mxu0 0
        %858 = vmatprep.subr.bf16.mxu0 0
        %859 = vmatpush1.bf16.msra.mxu0 0
        %860 = vmatprep.subr.bf16.mxu0 0
        %861 = vmatpush1.bf16.msra.mxu0 0
        %862 = vmatprep.subr.bf16.mxu0 0
        %863 = vmatpush1.bf16.msra.mxu0 0
        %864 = vmatprep.subr.bf16.mxu0 0
        %865 = vmatpush1.bf16.msra.mxu0 0
        %866 = vmatprep.subr.bf16.mxu0 0
        %867 = vmatpush1.bf16.msra.mxu0 0
        %868 = vmatprep.subr.bf16.mxu0 0
        %869 = vmatpush1.bf16.msra.mxu0 0
        %870 = vmatprep.subr.bf16.mxu0 0
        %871 = vmatpush1.bf16.msra.mxu0 0
        %872 = vmatprep.subr.bf16.mxu0 0
        %873 = vmatpush1.bf16.msra.mxu0 0
        %874 = vmatprep.subr.bf16.mxu0 0
        %875 = vmatpush1.bf16.msra.mxu0 0
        %876 = vmatprep.subr.bf16.mxu0 0
        %877 = vmatpush1.bf16.msra.mxu0 0
        %878 = vmatprep.subr.bf16.mxu0 0
        %879 = vmatpush1.bf16.msra.mxu0 0
        %880 = vmatprep.subr.bf16.mxu0 0
        %881 = vmatpush1.bf16.msra.mxu0 0
        %882 = vmatprep.mubr.bf16.mxu0 0
        %883 = vmatmul.mubr.bf16.gmra.mrb[0].mxu0 %v845
        %v884 = vpop.f32.mrb[0].mxu0
        %v885 = vadd.f32 0.0, %v884
        %v886 = vpop.f32.mrb[0].mxu0
        %v887 = vpop.f32.mrb[0].mxu0
        %v888 = vadd.f32 0.0, %v887
        %v889 = vpop.f32.mrb[0].mxu0
        %890 = vmatprep.mubr.bf16.mxu0 0
        %891 = vmatmul.mubr.bf16.gmra.mrb[0].mxu0 %v848
        %v892 = vpop.f32.mrb[0].mxu0
        %v893 = vadd.f32 0.0, %v892
        %v894 = vpop.f32.mrb[0].mxu0
        %v895 = vpop.f32.mrb[0].mxu0
        %v896 = vadd.f32 0.0, %v895
        %v897 = vpop.f32.mrb[0].mxu0
        %898 = vdwg.mxu0
        %v903 = vunpack.c.l.b16 %v777
        %v904 = vunpack.c.l.b16 %v778
        %v905 = vunpack.c.l.b16 %v779
        %v906 = vunpack.c.l.b16 %v780
        %v907 = vpack.c.b16 %v904, %v903
        %v908 = vpack.c.b16 %v906, %v905
        %v910 = vsel %vm843, %v907, 0
        %v913 = vsel %vm843, %v908, 0
        %915 = vmatprep.subr.bf16.mxu0 0
        %916 = vmatpush1.bf16.msra.mxu0 %v771
        %917 = vmatprep.subr.bf16.mxu0 0
        %918 = vmatpush1.bf16.msra.mxu0 0
        %919 = vmatprep.subr.bf16.mxu0 0
        %920 = vmatpush1.bf16.msra.mxu0 0
        %921 = vmatprep.subr.bf16.mxu0 0
        %922 = vmatpush1.bf16.msra.mxu0 0
        %923 = vmatprep.subr.bf16.mxu0 0
        %924 = vmatpush1.bf16.msra.mxu0 0
        %925 = vmatprep.subr.bf16.mxu0 0
        %926 = vmatpush1.bf16.msra.mxu0 0
        %927 = vmatprep.subr.bf16.mxu0 0
        %928 = vmatpush1.bf16.msra.mxu0 0
        %929 = vmatprep.subr.bf16.mxu0 0
        %930 = vmatpush1.bf16.msra.mxu0 0
        %931 = vmatprep.subr.bf16.mxu0 0
        %932 = vmatpush1.bf16.msra.mxu0 0
        %933 = vmatprep.subr.bf16.mxu0 0
        %934 = vmatpush1.bf16.msra.mxu0 0
        %935 = vmatprep.subr.bf16.mxu0 0
        %936 = vmatpush1.bf16.msra.mxu0 0
        %937 = vmatprep.subr.bf16.mxu0 0
        %938 = vmatpush1.bf16.msra.mxu0 0
        %939 = vmatprep.subr.bf16.mxu0 0
        %940 = vmatpush1.bf16.msra.mxu0 0
        %941 = vmatprep.subr.bf16.mxu0 0
        %942 = vmatpush1.bf16.msra.mxu0 0
        %943 = vmatprep.subr.bf16.mxu0 0
        %944 = vmatpush1.bf16.msra.mxu0 0
        %945 = vmatprep.subr.bf16.mxu0 0
        %946 = vmatpush1.bf16.msra.mxu0 0
        %947 = vmatprep.mubr.bf16.mxu0 0
        %948 = vmatmul.mubr.bf16.gmra.mrb[0].mxu0 %v910
        %v949 = vpop.f32.mrb[0].mxu0
        %v950 = vadd.f32 0.0, %v949
        %v951 = vpop.f32.mrb[0].mxu0
        %v952 = vpop.f32.mrb[0].mxu0
        %v953 = vadd.f32 0.0, %v952
        %v954 = vpop.f32.mrb[0].mxu0
        %955 = vmatprep.mubr.bf16.mxu0 0
        %956 = vmatmul.mubr.bf16.gmra.mrb[0].mxu0 %v913
        %v957 = vpop.f32.mrb[0].mxu0
        %v958 = vadd.f32 0.0, %v957
        %v959 = vpop.f32.mrb[0].mxu0
        %v960 = vpop.f32.mrb[0].mxu0
        %v961 = vadd.f32 0.0, %v960
        %v962 = vpop.f32.mrb[0].mxu0
        %963 = vdwg.mxu0
        %v964 = vadd.bf16 %v562, %v771
        %v969 = vunpack.c.l.b16 %v782
        %v970 = vunpack.c.l.b16 %v783
        %v971 = vunpack.c.l.b16 %v784
        %v972 = vunpack.c.l.b16 %v785
        %v973 = vpack.c.b16 %v970, %v969
        %v974 = vpack.c.b16 %v972, %v971
        %v976 = vsel %vm843, %v973, 0
        %v979 = vsel %vm843, %v974, 0
        %981 = vmatprep.subr.bf16.mxu0 0
        %982 = vmatpush1.bf16.msra.mxu0 %v964
        %983 = vmatprep.subr.bf16.mxu0 0
        %984 = vmatpush1.bf16.msra.mxu0 0
        %985 = vmatprep.subr.bf16.mxu0 0
        %986 = vmatpush1.bf16.msra.mxu0 0
        %987 = vmatprep.subr.bf16.mxu0 0
        %988 = vmatpush1.bf16.msra.mxu0 0
        %989 = vmatprep.subr.bf16.mxu0 0
        %990 = vmatpush1.bf16.msra.mxu0 0
        %991 = vmatprep.subr.bf16.mxu0 0
        %992 = vmatpush1.bf16.msra.mxu0 0
        %993 = vmatprep.subr.bf16.mxu0 0
        %994 = vmatpush1.bf16.msra.mxu0 0
        %995 = vmatprep.subr.bf16.mxu0 0
        %996 = vmatpush1.bf16.msra.mxu0 0
        %997 = vmatprep.subr.bf16.mxu0 0
        %998 = vmatpush1.bf16.msra.mxu0 0
        %999 = vmatprep.subr.bf16.mxu0 0
        %1000 = vmatpush1.bf16.msra.mxu0 0
        %1001 = vmatprep.subr.bf16.mxu0 0
        %1002 = vmatpush1.bf16.msra.mxu0 0
        %1003 = vmatprep.subr.bf16.mxu0 0
        %1004 = vmatpush1.bf16.msra.mxu0 0
        %1005 = vmatprep.subr.bf16.mxu0 0
        %1006 = vmatpush1.bf16.msra.mxu0 0
        %1007 = vmatprep.subr.bf16.mxu0 0
        %1008 = vmatpush1.bf16.msra.mxu0 0
        %1009 = vmatprep.subr.bf16.mxu0 0
        %1010 = vmatpush1.bf16.msra.mxu0 0
        %1011 = vmatprep.subr.bf16.mxu0 0
        %1012 = vmatpush1.bf16.msra.mxu0 0
        %1013 = vmatprep.mubr.bf16.mxu0 0
        %1014 = vmatmul.mubr.bf16.gmra.mrb[0].mxu0 %v976
        %v1015 = vpop.f32.mrb[0].mxu0
        %v1016 = vadd.f32 0.0, %v1015
        %v1017 = vpop.f32.mrb[0].mxu0
        %v1018 = vpop.f32.mrb[0].mxu0
        %v1019 = vadd.f32 0.0, %v1018
        %v1020 = vpop.f32.mrb[0].mxu0
        %1021 = vmatprep.mubr.bf16.mxu0 0
        %1022 = vmatmul.mubr.bf16.gmra.mrb[0].mxu0 %v979
        %v1023 = vpop.f32.mrb[0].mxu0
        %v1024 = vadd.f32 0.0, %v1023
        %v1025 = vpop.f32.mrb[0].mxu0
        %v1026 = vpop.f32.mrb[0].mxu0
        %v1027 = vadd.f32 0.0, %v1026
        %v1028 = vpop.f32.mrb[0].mxu0
        %1029 = vdwg.mxu0
        %v1030 = vsub.f32 %v885, %v950
        %v1031 = vsub.f32 %v888, %v953
        %v1032 = vsub.f32 %v893, %v958
        %v1033 = vsub.f32 %v896, %v961
        %v1034 = vsub.f32 %v1016, %v885
        %v1035 = vsub.f32 %v1019, %v888
        %v1036 = vsub.f32 %v1024, %v893
        %v1037 = vsub.f32 %v1027, %v896
        %v1038 = vsub.f32 %v1034, %v950
        %v1039 = vsub.f32 %v1035, %v953
        %v1040 = vsub.f32 %v1036, %v958
        %v1041 = vsub.f32 %v1037, %v961
        %v1042 = vpack.c.bf16 %v1031, %v1030
        %v1043 = vpack.c.bf16 %v1033, %v1032
        %v1044 = vpack.c.bf16 %v1039, %v1038
        %v1045 = vpack.c.bf16 %v1041, %v1040
        %v1048 = vunpack.c.l.b16 %v786
        %v1049 = vunpack.c.l.b16 %v787
        %v1050 = vpack.c.b16 %v1049, %v1048
        %v1053 = vsel %vm843, %v1042, 0
        %v1056 = vsel %vm843, %v1043, 0
        %1058 = vmatprep.subr.bf16.mxu0 0
        %1059 = vmatpush1.bf16.msra.mxu0 %v1050
        %1060 = vmatprep.subr.bf16.mxu0 0
        %1061 = vmatpush1.bf16.msra.mxu0 0
        %1062 = vmatprep.subr.bf16.mxu0 0
        %1063 = vmatpush1.bf16.msra.mxu0 0
        %1064 = vmatprep.subr.bf16.mxu0 0
        %1065 = vmatpush1.bf16.msra.mxu0 0
        %1066 = vmatprep.subr.bf16.mxu0 0
        %1067 = vmatpush1.bf16.msra.mxu0 0
        %1068 = vmatprep.subr.bf16.mxu0 0
        %1069 = vmatpush1.bf16.msra.mxu0 0
        %1070 = vmatprep.subr.bf16.mxu0 0
        %1071 = vmatpush1.bf16.msra.mxu0 0
        %1072 = vmatprep.subr.bf16.mxu0 0
        %1073 = vmatpush1.bf16.msra.mxu0 0
        %1074 = vmatprep.subr.bf16.mxu0 0
        %1075 = vmatpush1.bf16.msra.mxu0 0
        %1076 = vmatprep.subr.bf16.mxu0 0
        %1077 = vmatpush1.bf16.msra.mxu0 0
        %1078 = vmatprep.subr.bf16.mxu0 0
        %1079 = vmatpush1.bf16.msra.mxu0 0
        %1080 = vmatprep.subr.bf16.mxu0 0
        %1081 = vmatpush1.bf16.msra.mxu0 0
        %1082 = vmatprep.subr.bf16.mxu0 0
        %1083 = vmatpush1.bf16.msra.mxu0 0
        %1084 = vmatprep.subr.bf16.mxu0 0
        %1085 = vmatpush1.bf16.msra.mxu0 0
        %1086 = vmatprep.subr.bf16.mxu0 0
        %1087 = vmatpush1.bf16.msra.mxu0 0
        %1088 = vmatprep.subr.bf16.mxu0 0
        %1089 = vmatpush1.bf16.msra.mxu0 0
        %1090 = vmatprep.mubr.bf16.mxu0 0
        %1091 = vmatmul.mubr.bf16.gmra.mrb[0].mxu0 %v1053
        %v1092 = vpop.f32.mrb[0].mxu0
        %v1093 = vadd.f32 0.0, %v1092
        %v1094 = vpop.f32.mrb[0].mxu0
        %v1095 = vpop.f32.mrb[0].mxu0
        %v1096 = vadd.f32 0.0, %v1095
        %v1097 = vpop.f32.mrb[0].mxu0
        %1098 = vmatprep.mubr.bf16.mxu0 0
        %1099 = vmatmul.mubr.bf16.gmra.mrb[0].mxu0 %v1056
        %v1100 = vpop.f32.mrb[0].mxu0
        %v1101 = vadd.f32 0.0, %v1100
        %v1102 = vpop.f32.mrb[0].mxu0
        %v1103 = vpop.f32.mrb[0].mxu0
        %v1104 = vadd.f32 0.0, %v1103
        %v1105 = vpop.f32.mrb[0].mxu0
        %1106 = vdwg.mxu0
        %v1109 = vunpack.c.l.b16 %v789
        %v1110 = vunpack.c.l.b16 %v790
        %v1111 = vpack.c.b16 %v1110, %v1109
        %v1114 = vsel %vm843, %v1044, 0
        %v1117 = vsel %vm843, %v1045, 0
        %1119 = vmatprep.subr.bf16.mxu0 0
        %1120 = vmatpush1.bf16.msra.mxu0 %v1111
        %1121 = vmatprep.subr.bf16.mxu0 0
        %1122 = vmatpush1.bf16.msra.mxu0 0
        %1123 = vmatprep.subr.bf16.mxu0 0
        %1124 = vmatpush1.bf16.msra.mxu0 0
        %1125 = vmatprep.subr.bf16.mxu0 0
        %1126 = vmatpush1.bf16.msra.mxu0 0
        %1127 = vmatprep.subr.bf16.mxu0 0
        %1128 = vmatpush1.bf16.msra.mxu0 0
        %1129 = vmatprep.subr.bf16.mxu0 0
        %1130 = vmatpush1.bf16.msra.mxu0 0
        %1131 = vmatprep.subr.bf16.mxu0 0
        %1132 = vmatpush1.bf16.msra.mxu0 0
        %1133 = vmatprep.subr.bf16.mxu0 0
        %1134 = vmatpush1.bf16.msra.mxu0 0
        %1135 = vmatprep.subr.bf16.mxu0 0
        %1136 = vmatpush1.bf16.msra.mxu0 0
        %1137 = vmatprep.subr.bf16.mxu0 0
        %1138 = vmatpush1.bf16.msra.mxu0 0
        %1139 = vmatprep.subr.bf16.mxu0 0
        %1140 = vmatpush1.bf16.msra.mxu0 0
        %1141 = vmatprep.subr.bf16.mxu0 0
        %1142 = vmatpush1.bf16.msra.mxu0 0
        %1143 = vmatprep.subr.bf16.mxu0 0
        %1144 = vmatpush1.bf16.msra.mxu0 0
        %1145 = vmatprep.subr.bf16.mxu0 0
        %1146 = vmatpush1.bf16.msra.mxu0 0
        %1147 = vmatprep.subr.bf16.mxu0 0
        %1148 = vmatpush1.bf16.msra.mxu0 0
        %1149 = vmatprep.subr.bf16.mxu0 0
        %1150 = vmatpush1.bf16.msra.mxu0 0
        %1151 = vmatprep.mubr.bf16.mxu0 0
        %1152 = vmatmul.mubr.bf16.gmra.mrb[0].mxu0 %v1114
        %v1153 = vpop.f32.mrb[0].mxu0
        %v1154 = vadd.f32 0.0, %v1153
        %v1155 = vpop.f32.mrb[0].mxu0
        %v1156 = vpop.f32.mrb[0].mxu0
        %v1157 = vadd.f32 0.0, %v1156
        %v1158 = vpop.f32.mrb[0].mxu0
        %1159 = vmatprep.mubr.bf16.mxu0 0
        %1160 = vmatmul.mubr.bf16.gmra.mrb[0].mxu0 %v1117
        %v1161 = vpop.f32.mrb[0].mxu0
        %v1162 = vadd.f32 0.0, %v1161
        %v1163 = vpop.f32.mrb[0].mxu0
        %v1164 = vpop.f32.mrb[0].mxu0
        %v1165 = vadd.f32 0.0, %v1164
        %v1166 = vpop.f32.mrb[0].mxu0
        %1167 = vdwg.mxu0
        %v1168 = vadd.bf16 %v1042, %v1044
        %v1169 = vadd.bf16 %v1043, %v1045
        %v1172 = vunpack.c.l.b16 %v792
        %v1173 = vunpack.c.l.b16 %v793
        %v1174 = vpack.c.b16 %v1173, %v1172
        %v1177 = vsel %vm843, %v1168, 0
        %v1180 = vsel %vm843, %v1169, 0
        %1182 = vmatprep.subr.bf16.mxu0 0
        %1183 = vmatpush1.bf16.msra.mxu0 %v1174
        %1184 = vmatprep.subr.bf16.mxu0 0
        %1185 = vmatpush1.bf16.msra.mxu0 0
        %1186 = vmatprep.subr.bf16.mxu0 0
        %1187 = vmatpush1.bf16.msra.mxu0 0
        %1188 = vmatprep.subr.bf16.mxu0 0
        %1189 = vmatpush1.bf16.msra.mxu0 0
        %1190 = vmatprep.subr.bf16.mxu0 0
        %1191 = vmatpush1.bf16.msra.mxu0 0
        %1192 = vmatprep.subr.bf16.mxu0 0
        %1193 = vmatpush1.bf16.msra.mxu0 0
        %1194 = vmatprep.subr.bf16.mxu0 0
        %1195 = vmatpush1.bf16.msra.mxu0 0
        %1196 = vmatprep.subr.bf16.mxu0 0
        %1197 = vmatpush1.bf16.msra.mxu0 0
        %1198 = vmatprep.subr.bf16.mxu0 0
        %1199 = vmatpush1.bf16.msra.mxu0 0
        %1200 = vmatprep.subr.bf16.mxu0 0
        %1201 = vmatpush1.bf16.msra.mxu0 0
        %1202 = vmatprep.subr.bf16.mxu0 0
        %1203 = vmatpush1.bf16.msra.mxu0 0
        %1204 = vmatprep.subr.bf16.mxu0 0
        %1205 = vmatpush1.bf16.msra.mxu0 0
        %1206 = vmatprep.subr.bf16.mxu0 0
        %1207 = vmatpush1.bf16.msra.mxu0 0
        %1208 = vmatprep.subr.bf16.mxu0 0
        %1209 = vmatpush1.bf16.msra.mxu0 0
        %1210 = vmatprep.subr.bf16.mxu0 0
        %1211 = vmatpush1.bf16.msra.mxu0 0
        %1212 = vmatprep.subr.bf16.mxu0 0
        %1213 = vmatpush1.bf16.msra.mxu0 0
        %1214 = vmatprep.mubr.bf16.mxu0 0
        %1215 = vmatmul.mubr.bf16.gmra.mrb[0].mxu0 %v1177
        %v1216 = vpop.f32.mrb[0].mxu0
        %v1217 = vadd.f32 0.0, %v1216
        %v1218 = vpop.f32.mrb[0].mxu0
        %v1219 = vpop.f32.mrb[0].mxu0
        %v1220 = vadd.f32 0.0, %v1219
        %v1221 = vpop.f32.mrb[0].mxu0
        %1222 = vmatprep.mubr.bf16.mxu0 0
        %1223 = vmatmul.mubr.bf16.gmra.mrb[0].mxu0 %v1180
        %v1224 = vpop.f32.mrb[0].mxu0
        %v1225 = vadd.f32 0.0, %v1224
        %v1226 = vpop.f32.mrb[0].mxu0
        %v1227 = vpop.f32.mrb[0].mxu0
        %v1228 = vadd.f32 0.0, %v1227
        %v1229 = vpop.f32.mrb[0].mxu0
        %1230 = vdwg.mxu0
        %v1231 = vsub.f32 %v1093, %v1154
        %v1232 = vsub.f32 %v1096, %v1157
        %v1233 = vsub.f32 %v1101, %v1162
        %v1234 = vsub.f32 %v1104, %v1165
        %v1235 = vsub.f32 %v1217, %v1093
        %v1236 = vsub.f32 %v1220, %v1096
        %v1237 = vsub.f32 %v1225, %v1101
        %v1238 = vsub.f32 %v1228, %v1104
        %v1239 = vsub.f32 %v1235, %v1154
        %v1240 = vsub.f32 %v1236, %v1157
        %v1241 = vsub.f32 %v1237, %v1162
        %v1242 = vsub.f32 %v1238, %v1165
        %v1243 = vmul.f32 %v820, %v1231
        %v1244 = vmul.f32 %v821, %v1232
        %v1245 = vmul.f32 %v822, %v1233
        %v1246 = vmul.f32 %v823, %v1234
        %v1247 = vmul.f32 %v829, %v1239
        %v1248 = vmul.f32 %v830, %v1240
        %v1249 = vmul.f32 %v831, %v1241
        %v1250 = vmul.f32 %v832, %v1242
        %v1251 = vsub.f32 %v1243, %v1247
        %v1252 = vsub.f32 %v1244, %v1248
        %v1253 = vsub.f32 %v1245, %v1249
        %v1254 = vsub.f32 %v1246, %v1250
        %v1255 = vmul.f32 %v820, %v1239
        %v1256 = vmul.f32 %v821, %v1240
        %v1257 = vmul.f32 %v822, %v1241
        %v1258 = vmul.f32 %v823, %v1242
        %v1259 = vmul.f32 %v829, %v1231
        %v1260 = vmul.f32 %v830, %v1232
        %v1261 = vmul.f32 %v831, %v1233
        %v1262 = vmul.f32 %v832, %v1234
        %v1263 = vadd.f32 %v1255, %v1259
        %v1264 = vadd.f32 %v1256, %v1260
        %v1265 = vadd.f32 %v1257, %v1261
        %v1266 = vadd.f32 %v1258, %v1262
        %v1267 = vpack.c.bf16 %v1252, %v1251
        %v1268 = vpack.c.bf16 %v1254, %v1253
        %v1269 = vpack.c.bf16 %v1264, %v1263
        %v1270 = vpack.c.bf16 %v1266, %v1265
        %v1273 = vunpack.c.l.b16 %v794
        %v1274 = vunpack.c.l.b16 %v795
        %v1275 = vpack.c.b16 %v1274, %v1273
        %vm1276 = vcmask 261120
        %v1278 = vsel %vm1276, %v1275, 0
        %1280 = vmatprep.subr.bf16.mxu0 0
        %1281 = vmatpush1.bf16.msra.mxu0 %v1267
        %1282 = vmatprep.subr.bf16.mxu0 0
        %1283 = vmatpush1.bf16.msra.mxu0 %v1268
        %1284 = vmatprep.subr.bf16.mxu0 0
        %1285 = vmatpush1.bf16.msra.mxu0 0
        %1286 = vmatprep.subr.bf16.mxu0 0
        %1287 = vmatpush1.bf16.msra.mxu0 0
        %1288 = vmatprep.subr.bf16.mxu0 0
        %1289 = vmatpush1.bf16.msra.mxu0 0
        %1290 = vmatprep.subr.bf16.mxu0 0
        %1291 = vmatpush1.bf16.msra.mxu0 0
        %1292 = vmatprep.subr.bf16.mxu0 0
        %1293 = vmatpush1.bf16.msra.mxu0 0
        %1294 = vmatprep.subr.bf16.mxu0 0
        %1295 = vmatpush1.bf16.msra.mxu0 0
        %1296 = vmatprep.subr.bf16.mxu0 0
        %1297 = vmatpush1.bf16.msra.mxu0 0
        %1298 = vmatprep.subr.bf16.mxu0 0
        %1299 = vmatpush1.bf16.msra.mxu0 0
        %1300 = vmatprep.subr.bf16.mxu0 0
        %1301 = vmatpush1.bf16.msra.mxu0 0
        %1302 = vmatprep.subr.bf16.mxu0 0
        %1303 = vmatpush1.bf16.msra.mxu0 0
        %1304 = vmatprep.subr.bf16.mxu0 0
        %1305 = vmatpush1.bf16.msra.mxu0 0
        %1306 = vmatprep.subr.bf16.mxu0 0
        %1307 = vmatpush1.bf16.msra.mxu0 0
        %1308 = vmatprep.subr.bf16.mxu0 0
        %1309 = vmatpush1.bf16.msra.mxu0 0
        %1310 = vmatprep.subr.bf16.mxu0 0
        %1311 = vmatpush1.bf16.msra.mxu0 0
        %1312 = vmatprep.mubr.bf16.mxu0 0
        %1313 = vmatmul.mubr.bf16.gmra.mrb[0].mxu0 %v1278
        %v1314 = vpop.f32.mrb[0].mxu0
        %v1315 = vadd.f32 0.0, %v1314
        %v1316 = vpop.f32.mrb[0].mxu0
        %v1317 = vpop.f32.mrb[0].mxu0
        %v1318 = vadd.f32 0.0, %v1317
        %v1319 = vpop.f32.mrb[0].mxu0
        %1320 = vdwg.mxu0
        %v1323 = vunpack.c.l.b16 %v797
        %v1324 = vunpack.c.l.b16 %v798
        %v1325 = vpack.c.b16 %v1324, %v1323
        %v1327 = vsel %vm1276, %v1325, 0
        %1329 = vmatprep.subr.bf16.mxu0 0
        %1330 = vmatpush1.bf16.msra.mxu0 %v1269
        %1331 = vmatprep.subr.bf16.mxu0 0
        %1332 = vmatpush1.bf16.msra.mxu0 %v1270
        %1333 = vmatprep.subr.bf16.mxu0 0
        %1334 = vmatpush1.bf16.msra.mxu0 0
        %1335 = vmatprep.subr.bf16.mxu0 0
        %1336 = vmatpush1.bf16.msra.mxu0 0
        %1337 = vmatprep.subr.bf16.mxu0 0
        %1338 = vmatpush1.bf16.msra.mxu0 0
        %1339 = vmatprep.subr.bf16.mxu0 0
        %1340 = vmatpush1.bf16.msra.mxu0 0
        %1341 = vmatprep.subr.bf16.mxu0 0
        %1342 = vmatpush1.bf16.msra.mxu0 0
        %1343 = vmatprep.subr.bf16.mxu0 0
        %1344 = vmatpush1.bf16.msra.mxu0 0
        %1345 = vmatprep.subr.bf16.mxu0 0
        %1346 = vmatpush1.bf16.msra.mxu0 0
        %1347 = vmatprep.subr.bf16.mxu0 0
        %1348 = vmatpush1.bf16.msra.mxu0 0
        %1349 = vmatprep.subr.bf16.mxu0 0
        %1350 = vmatpush1.bf16.msra.mxu0 0
        %1351 = vmatprep.subr.bf16.mxu0 0
        %1352 = vmatpush1.bf16.msra.mxu0 0
        %1353 = vmatprep.subr.bf16.mxu0 0
        %1354 = vmatpush1.bf16.msra.mxu0 0
        %1355 = vmatprep.subr.bf16.mxu0 0
        %1356 = vmatpush1.bf16.msra.mxu0 0
        %1357 = vmatprep.subr.bf16.mxu0 0
        %1358 = vmatpush1.bf16.msra.mxu0 0
        %1359 = vmatprep.subr.bf16.mxu0 0
        %1360 = vmatpush1.bf16.msra.mxu0 0
        %1361 = vmatprep.mubr.bf16.mxu0 0
        %1362 = vmatmul.mubr.bf16.gmra.mrb[0].mxu0 %v1327
        %v1363 = vpop.f32.mrb[0].mxu0
        %v1364 = vadd.f32 0.0, %v1363
        %v1365 = vpop.f32.mrb[0].mxu0
        %v1366 = vpop.f32.mrb[0].mxu0
        %v1367 = vadd.f32 0.0, %v1366
        %v1368 = vpop.f32.mrb[0].mxu0
        %1369 = vdwg.mxu0
        %v1370 = vadd.bf16 %v1267, %v1269
        %v1371 = vadd.bf16 %v1268, %v1270
        %v1374 = vunpack.c.l.b16 %v800
        %v1375 = vunpack.c.l.b16 %v801
        %v1376 = vpack.c.b16 %v1375, %v1374
        %v1378 = vsel %vm1276, %v1376, 0
        %1380 = vmatprep.subr.bf16.mxu0 0
        %1381 = vmatpush1.bf16.msra.mxu0 %v1370
        %1382 = vmatprep.subr.bf16.mxu0 0
        %1383 = vmatpush1.bf16.msra.mxu0 %v1371
        %1384 = vmatprep.subr.bf16.mxu0 0
        %1385 = vmatpush1.bf16.msra.mxu0 0
        %1386 = vmatprep.subr.bf16.mxu0 0
        %1387 = vmatpush1.bf16.msra.mxu0 0
        %1388 = vmatprep.subr.bf16.mxu0 0
        %1389 = vmatpush1.bf16.msra.mxu0 0
        %1390 = vmatprep.subr.bf16.mxu0 0
        %1391 = vmatpush1.bf16.msra.mxu0 0
        %1392 = vmatprep.subr.bf16.mxu0 0
        %1393 = vmatpush1.bf16.msra.mxu0 0
        %1394 = vmatprep.subr.bf16.mxu0 0
        %1395 = vmatpush1.bf16.msra.mxu0 0
        %1396 = vmatprep.subr.bf16.mxu0 0
        %1397 = vmatpush1.bf16.msra.mxu0 0
        %1398 = vmatprep.subr.bf16.mxu0 0
        %1399 = vmatpush1.bf16.msra.mxu0 0
        %1400 = vmatprep.subr.bf16.mxu0 0
        %1401 = vmatpush1.bf16.msra.mxu0 0
        %1402 = vmatprep.subr.bf16.mxu0 0
        %1403 = vmatpush1.bf16.msra.mxu0 0
        %1404 = vmatprep.subr.bf16.mxu0 0
        %1405 = vmatpush1.bf16.msra.mxu0 0
        %1406 = vmatprep.subr.bf16.mxu0 0
        %1407 = vmatpush1.bf16.msra.mxu0 0
        %1408 = vmatprep.subr.bf16.mxu0 0
        %1409 = vmatpush1.bf16.msra.mxu0 0
        %1410 = vmatprep.subr.bf16.mxu0 0
        %1411 = vmatpush1.bf16.msra.mxu0 0
        %1412 = vmatprep.mubr.bf16.mxu0 0
        %1413 = vmatmul.mubr.bf16.gmra.mrb[0].mxu0 %v1378
        %v1414 = vpop.f32.mrb[0].mxu0
        %v1415 = vadd.f32 0.0, %v1414
        %v1416 = vpop.f32.mrb[0].mxu0
        %v1417 = vpop.f32.mrb[0].mxu0
        %v1418 = vadd.f32 0.0, %v1417
        %v1419 = vpop.f32.mrb[0].mxu0
        %1420 = vdwg.mxu0
        %v1421 = vsub.f32 %v1315, %v1364
        %v1422 = vsub.f32 %v1318, %v1367
        %v1423 = vsub.f32 %v1415, %v1315
        %v1424 = vsub.f32 %v1418, %v1318
        %v1425 = vsub.f32 %v1423, %v1364
        %v1426 = vsub.f32 %v1424, %v1367
        %v1427 = vpack.c.bf16 %v1422, %v1421
        %v1428 = vpack.c.bf16 %v1426, %v1425
        %v1433 = vunpack.c.l.b16 %v802
        %v1434 = vunpack.c.l.b16 %v803
        %v1435 = vunpack.c.l.b16 %v804
        %v1436 = vunpack.c.l.b16 %v805
        %v1437 = vpack.c.b16 %v1434, %v1433
        %v1438 = vpack.c.b16 %v1436, %v1435
        %v1442 = vsel %vm1276, %v1427, 0
        %1444 = vmatprep.subr.bf16.mxu0 0
        %1445 = vmatpush1.bf16.msra.mxu0 %v1437
        %1446 = vmatprep.subr.bf16.mxu0 0
        %1447 = vmatpush1.bf16.msra.mxu0 %v1438
        %1448 = vmatprep.subr.bf16.mxu0 0
        %1449 = vmatpush1.bf16.msra.mxu0 0
        %1450 = vmatprep.subr.bf16.mxu0 0
        %1451 = vmatpush1.bf16.msra.mxu0 0
        %1452 = vmatprep.subr.bf16.mxu0 0
        %1453 = vmatpush1.bf16.msra.mxu0 0
        %1454 = vmatprep.subr.bf16.mxu0 0
        %1455 = vmatpush1.bf16.msra.mxu0 0
        %1456 = vmatprep.subr.bf16.mxu0 0
        %1457 = vmatpush1.bf16.msra.mxu0 0
        %1458 = vmatprep.subr.bf16.mxu0 0
        %1459 = vmatpush1.bf16.msra.mxu0 0
        %1460 = vmatprep.subr.bf16.mxu0 0
        %1461 = vmatpush1.bf16.msra.mxu0 0
        %1462 = vmatprep.subr.bf16.mxu0 0
        %1463 = vmatpush1.bf16.msra.mxu0 0
        %1464 = vmatprep.subr.bf16.mxu0 0
        %1465 = vmatpush1.bf16.msra.mxu0 0
        %1466 = vmatprep.subr.bf16.mxu0 0
        %1467 = vmatpush1.bf16.msra.mxu0 0
        %1468 = vmatprep.subr.bf16.mxu0 0
        %1469 = vmatpush1.bf16.msra.mxu0 0
        %1470 = vmatprep.subr.bf16.mxu0 0
        %1471 = vmatpush1.bf16.msra.mxu0 0
        %1472 = vmatprep.subr.bf16.mxu0 0
        %1473 = vmatpush1.bf16.msra.mxu0 0
        %1474 = vmatprep.subr.bf16.mxu0 0
        %1475 = vmatpush1.bf16.msra.mxu0 0
        %1476 = vmatprep.mubr.bf16.mxu0 0
        %1477 = vmatmul.mubr.bf16.gmra.mrb[0].mxu0 %v1442
        %v1478 = vpop.f32.mrb[0].mxu0
        %v1479 = vadd.f32 0.0, %v1478
        %v1480 = vpop.f32.mrb[0].mxu0
        %v1481 = vpop.f32.mrb[0].mxu0
        %v1482 = vadd.f32 0.0, %v1481
        %v1483 = vpop.f32.mrb[0].mxu0
        %1484 = vdwg.mxu0
        %v1489 = vunpack.c.l.b16 %v807
        %v1490 = vunpack.c.l.b16 %v808
        %v1491 = vunpack.c.l.b16 %v809
        %v1492 = vunpack.c.l.b16 %v810
        %v1493 = vpack.c.b16 %v1490, %v1489
        %v1494 = vpack.c.b16 %v1492, %v1491
        %v1498 = vsel %vm1276, %v1428, 0
        %1500 = vmatprep.subr.bf16.mxu0 0
        %1501 = vmatpush1.bf16.msra.mxu0 %v1493
        %1502 = vmatprep.subr.bf16.mxu0 0
        %1503 = vmatpush1.bf16.msra.mxu0 %v1494
        %1504 = vmatprep.subr.bf16.mxu0 0
        %1505 = vmatpush1.bf16.msra.mxu0 0
        %1506 = vmatprep.subr.bf16.mxu0 0
        %1507 = vmatpush1.bf16.msra.mxu0 0
        %1508 = vmatprep.subr.bf16.mxu0 0
        %1509 = vmatpush1.bf16.msra.mxu0 0
        %1510 = vmatprep.subr.bf16.mxu0 0
        %1511 = vmatpush1.bf16.msra.mxu0 0
        %1512 = vmatprep.subr.bf16.mxu0 0
        %1513 = vmatpush1.bf16.msra.mxu0 0
        %1514 = vmatprep.subr.bf16.mxu0 0
        %1515 = vmatpush1.bf16.msra.mxu0 0
        %1516 = vmatprep.subr.bf16.mxu0 0
        %1517 = vmatpush1.bf16.msra.mxu0 0
        %1518 = vmatprep.subr.bf16.mxu0 0
        %1519 = vmatpush1.bf16.msra.mxu0 0
        %1520 = vmatprep.subr.bf16.mxu0 0
        %1521 = vmatpush1.bf16.msra.mxu0 0
        %1522 = vmatprep.subr.bf16.mxu0 0
        %1523 = vmatpush1.bf16.msra.mxu0 0
        %1524 = vmatprep.subr.bf16.mxu0 0
        %1525 = vmatpush1.bf16.msra.mxu0 0
        %1526 = vmatprep.subr.bf16.mxu0 0
        %1527 = vmatpush1.bf16.msra.mxu0 0
        %1528 = vmatprep.subr.bf16.mxu0 0
        %1529 = vmatpush1.bf16.msra.mxu0 0
        %1530 = vmatprep.subr.bf16.mxu0 0
        %1531 = vmatpush1.bf16.msra.mxu0 0
        %1532 = vmatprep.mubr.bf16.mxu0 0
        %1533 = vmatmul.mubr.bf16.gmra.mrb[0].mxu0 %v1498
        %v1534 = vpop.f32.mrb[0].mxu0
        %v1535 = vadd.f32 0.0, %v1534
        %v1536 = vpop.f32.mrb[0].mxu0
        %v1537 = vpop.f32.mrb[0].mxu0
        %v1538 = vadd.f32 0.0, %v1537
        %v1539 = vpop.f32.mrb[0].mxu0
        %1540 = vdwg.mxu0
        %v1541 = vadd.bf16 %v1427, %v1428
        %v1546 = vunpack.c.l.b16 %v812
        %v1547 = vunpack.c.l.b16 %v813
        %v1548 = vunpack.c.l.b16 %v814
        %v1549 = vunpack.c.l.b16 %v815
        %v1550 = vpack.c.b16 %v1547, %v1546
        %v1551 = vpack.c.b16 %v1549, %v1548
        %v1555 = vsel %vm1276, %v1541, 0
        %1557 = vmatprep.subr.bf16.mxu0 0
        %1558 = vmatpush1.bf16.msra.mxu0 %v1550
        %1559 = vmatprep.subr.bf16.mxu0 0
        %1560 = vmatpush1.bf16.msra.mxu0 %v1551
        %1561 = vmatprep.subr.bf16.mxu0 0
        %1562 = vmatpush1.bf16.msra.mxu0 0
        %1563 = vmatprep.subr.bf16.mxu0 0
        %1564 = vmatpush1.bf16.msra.mxu0 0
        %1565 = vmatprep.subr.bf16.mxu0 0
        %1566 = vmatpush1.bf16.msra.mxu0 0
        %1567 = vmatprep.subr.bf16.mxu0 0
        %1568 = vmatpush1.bf16.msra.mxu0 0
        %1569 = vmatprep.subr.bf16.mxu0 0
        %1570 = vmatpush1.bf16.msra.mxu0 0
        %1571 = vmatprep.subr.bf16.mxu0 0
        %1572 = vmatpush1.bf16.msra.mxu0 0
        %1573 = vmatprep.subr.bf16.mxu0 0
        %1574 = vmatpush1.bf16.msra.mxu0 0
        %1575 = vmatprep.subr.bf16.mxu0 0
        %1576 = vmatpush1.bf16.msra.mxu0 0
        %1577 = vmatprep.subr.bf16.mxu0 0
        %1578 = vmatpush1.bf16.msra.mxu0 0
        %1579 = vmatprep.subr.bf16.mxu0 0
        %1580 = vmatpush1.bf16.msra.mxu0 0
        %1581 = vmatprep.subr.bf16.mxu0 0
        %1582 = vmatpush1.bf16.msra.mxu0 0
        %1583 = vmatprep.subr.bf16.mxu0 0
        %1584 = vmatpush1.bf16.msra.mxu0 0
        %1585 = vmatprep.subr.bf16.mxu0 0
        %1586 = vmatpush1.bf16.msra.mxu0 0
        %1587 = vmatprep.subr.bf16.mxu0 0
        %1588 = vmatpush1.bf16.msra.mxu0 0
        %1589 = vmatprep.mubr.bf16.mxu0 0
        %1590 = vmatmul.mubr.bf16.gmra.mrb[0].mxu0 %v1555
        %v1591 = vpop.f32.mrb[0].mxu0
        %v1592 = vadd.f32 0.0, %v1591
        %v1593 = vpop.f32.mrb[0].mxu0
        %v1594 = vpop.f32.mrb[0].mxu0
        %v1595 = vadd.f32 0.0, %v1594
        %v1596 = vpop.f32.mrb[0].mxu0
        %1597 = vdwg.mxu0
        %v1598 = vsub.f32 %v1479, %v1535
        %v1599 = vsub.f32 %v1482, %v1538
        %v1600 = vsub.f32 %v1592, %v1479
        %v1601 = vsub.f32 %v1595, %v1482
        %v1602 = vsub.f32 %v1600, %v1535
        %v1603 = vsub.f32 %v1601, %v1538
        %v1604 = vmul.f32 %v1598, %v1598
        %v1605 = vmul.f32 %v1599, %v1599
        %v1606 = vmul.f32 %v1602, %v1602
        %v1607 = vmul.f32 %v1603, %v1603
        %v1608 = vadd.f32 %v1604, %v1606
        %v1609 = vadd.f32 %v1605, %v1607
        %v1610 = vrsqrt.pop %v1608
        %v1611 = vmul.f32 %v1608, %v1610
        %vm1612 = vcmp.eq.f32.partialorder %v1608, inf
        %v1613 = vsel %vm1612, %v1608, %v1611
        %vm1614 = vcmp.eq.f32.partialorder %v1608, 0.0
        %v1615 = vand.u32 %v1608, 2147483648
        %v1616 = vsel %vm1614, %v1615, %v1613
        %v1617 = vrsqrt.pop %v1609
        %v1618 = vmul.f32 %v1609, %v1617
        %vm1619 = vcmp.eq.f32.partialorder %v1609, inf
        %v1620 = vsel %vm1619, %v1609, %v1618
        %vm1621 = vcmp.eq.f32.partialorder %v1609, 0.0
        %v1622 = vand.u32 %v1609, 2147483648
        %v1623 = vsel %vm1621, %v1622, %v1620
        %1624 = vst.msk [vmem:[%s331] sm:$0xff] %vm843, %v1616
        %1625 = vst.msk [vmem:[%s331 + $0x8] sm:$0xff] %vm843, %v1623
        %v1626 = vand.u32 2147483647, %v1598
        %v1627 = vand.u32 2147483647, %v1602
        %v1628 = vmin.f32 %v1626, %v1627
        %v1629 = vmax.f32 %v1626, %v1627
        %v1630 = vrcp.pop %v1629
        %v1631 = vmul.f32 %v1628, %v1630
        %v1632 = vmul.f32 %v1631, %v1631
        %v1633 = vmul.f32 0.002785687, %v1632
        %v1634 = vadd.f32 %v1633, -0.015866
        %v1635 = vmul.f32 %v1634, %v1632
        %v1636 = vadd.f32 %v1635, 0.04247222
        %v1637 = vmul.f32 %v1636, %v1632
        %v1638 = vadd.f32 %v1637, -0.074975304
        %v1639 = vmul.f32 %v1638, %v1632
        %v1640 = vadd.f32 %v1639, 0.1064488
        %v1641 = vmul.f32 %v1640, %v1632
        %v1642 = vadd.f32 %v1641, -0.14207031
        %v1643 = vmul.f32 %v1642, %v1632
        %v1644 = vadd.f32 %v1643, 0.19993454
        %v1645 = vmul.f32 %v1644, %v1632
        %v1646 = vadd.f32 %v1645, -0.33333147
        %v1647 = vmul.f32 %v1646, %v1632
        %v1648 = vmul.f32 %v1647, %v1631
        %v1649 = vadd.f32 %v1648, %v1631
        %vm1650 = vcmp.gt.f32.partialorder %v1627, %v1626
        %v1651 = vsub.f32 1.5707964, %v1649
        %v1652 = vsel %vm1650, %v1651, %v1649
        %vm1653 = vcmp.lt.f32.partialorder %v1598, 0.0
        %v1654 = vsub.f32 3.1415927, %v1652
        %v1655 = vsel %vm1653, %v1654, %v1652
        %vm1656 = vcmp.lt.s32.totalorder %v1598, 0
        %v1657 = vsel %vm1656, 3.1415927, 0.0
        %vm1658 = vcmp.eq.f32.partialorder %v1602, 0.0
        %v1659 = vsel %vm1658, %v1657, %v1655
        %vm1660 = vcmp.ne.f32.partialorder %v1598, %v1598
        %vm1661 = vcmp.ne.f32.partialorder %v1602, %v1602
        %vm1662 = vmor %vm1660, %vm1661
        %v1663 = vsel %vm1662, nan, %v1659
        %vm1664 = vcmp.lt.f32.partialorder %v1598, 0.0
        %v1665 = vsel %vm1664, 2.3561945, 0.7853982
        %vm1666 = vcmp.eq.s32.totalorder %v1626, inf
        %vm1667 = vcmp.eq.s32.totalorder %v1627, inf
        %vm1668 = vmand %vm1666, %vm1667
        %v1669 = vsel %vm1668, %v1665, %v1663
        %v1670 = vand.u32 2147483647, %v1669
        %v1671 = vand.u32 %v1602, 2147483648
        %v1672 = vor.u32 %v1670, %v1671
        %v1673 = vand.u32 2147483647, %v1599
        %v1674 = vand.u32 2147483647, %v1603
        %v1675 = vmin.f32 %v1673, %v1674
        %v1676 = vmax.f32 %v1673, %v1674
        %v1677 = vrcp.pop %v1676
        %v1678 = vmul.f32 %v1675, %v1677
        %v1679 = vmul.f32 %v1678, %v1678
        %v1680 = vmul.f32 0.002785687, %v1679
        %v1681 = vadd.f32 %v1680, -0.015866
        %v1682 = vmul.f32 %v1681, %v1679
        %v1683 = vadd.f32 %v1682, 0.04247222
        %v1684 = vmul.f32 %v1683, %v1679
        %v1685 = vadd.f32 %v1684, -0.074975304
        %v1686 = vmul.f32 %v1685, %v1679
        %v1687 = vadd.f32 %v1686, 0.1064488
        %v1688 = vmul.f32 %v1687, %v1679
        %v1689 = vadd.f32 %v1688, -0.14207031
        %v1690 = vmul.f32 %v1689, %v1679
        %v1691 = vadd.f32 %v1690, 0.19993454
        %v1692 = vmul.f32 %v1691, %v1679
        %v1693 = vadd.f32 %v1692, -0.33333147
        %v1694 = vmul.f32 %v1693, %v1679
        %v1695 = vmul.f32 %v1694, %v1678
        %v1696 = vadd.f32 %v1695, %v1678
        %vm1697 = vcmp.gt.f32.partialorder %v1674, %v1673
        %v1698 = vsub.f32 1.5707964, %v1696
        %v1699 = vsel %vm1697, %v1698, %v1696
        %vm1700 = vcmp.lt.f32.partialorder %v1599, 0.0
        %v1701 = vsub.f32 3.1415927, %v1699
        %v1702 = vsel %vm1700, %v1701, %v1699
        %vm1703 = vcmp.lt.s32.totalorder %v1599, 0
        %v1704 = vsel %vm1703, 3.1415927, 0.0
        %vm1705 = vcmp.eq.f32.partialorder %v1603, 0.0
        %v1706 = vsel %vm1705, %v1704, %v1702
        %vm1707 = vcmp.ne.f32.partialorder %v1599, %v1599
        %vm1708 = vcmp.ne.f32.partialorder %v1603, %v1603
        %vm1709 = vmor %vm1707, %vm1708
        %v1710 = vsel %vm1709, nan, %v1706
        %vm1711 = vcmp.lt.f32.partialorder %v1599, 0.0
        %v1712 = vsel %vm1711, 2.3561945, 0.7853982
        %vm1713 = vcmp.eq.s32.totalorder %v1673, inf
        %vm1714 = vcmp.eq.s32.totalorder %v1674, inf
        %vm1715 = vmand %vm1713, %vm1714
        %v1716 = vsel %vm1715, %v1712, %v1710
        %v1717 = vand.u32 2147483647, %v1716
        %v1718 = vand.u32 %v1603, 2147483648
        %v1719 = vor.u32 %v1717, %v1718
        %1720 = vst.msk [vmem:[%s338] sm:$0xff] %vm843, %v1672
        %1721 = vst.msk [vmem:[%s338 + $0x8] sm:$0xff] %vm843, %v1719
        %s1722 = sand.u32 %s186, 1
        %s1723 = scalar_lea.sflag [#allocation4], %s1722
        %s1724 = sand.u32 %s186, 1
        %s1725 = smul.addr %s1724, 16
        %s1726 = scalar_lea.vmem [#allocation5], %s1725
        %s1727 = sand.u32 %s214, 1
        %s1728 = scalar_lea.sflag [#allocation7], %s1727
        %s1729 = sand.u32 %s214, 1
        %s1730 = smul.addr %s1729, 16
        %s1731 = scalar_lea.vmem [#allocation6], %s1730
        // Predicated region
        $region49: #{tpu_custom_call.1} parent=43 // pred_check
          %p1732 = pneg %p196
        $region50: #{tpu_custom_call.1} parent=43 // pred_check_branch
          %1734 = sbr.rel (%p1732) target = $region52
        $region51: #{tpu_custom_call.1} parent=43 // pred_region
          %s1736 = ssub.s32 256, 256
          %1737 = vsyncadd %s1723, %s1736
          %s1738 = smul.addr %s30, 2
          %s1739 = smul.addr %s31, 4
          %s1740 = sadd.s32 %s1738, %s1739
          %s1741 = smul.addr %s1740, 128
          %s1742 = scalar_lea.hbm %s6, %s1741
          %s1743 = sshll.u32 %s1726, 4
          %s1744 = int_to_ptr.vmem [resolvable:$true] %s1743
          %1749 = dma.vmem_to_hbm [thread:$0]  %s1744, 256, %s1742, %s1723, 128, 128, 8
        $region52: #{tpu_custom_call.1} parent=43 // pred_fallthru
          _
        // Predicated region
        $region53: #{tpu_custom_call.1} parent=43 // pred_check
          %p1750 = pneg %p224
        $region54: #{tpu_custom_call.1} parent=43 // pred_check_branch
          %1752 = sbr.rel (%p1750) target = $region56
        $region55: #{tpu_custom_call.1} parent=43 // pred_region
          %s1754 = ssub.s32 256, 256
          %1755 = vsyncadd %s1728, %s1754
          %s1756 = smul.addr %s30, 2
          %s1757 = smul.addr %s31, 4
          %s1758 = sadd.s32 %s1756, %s1757
          %s1759 = smul.addr %s1758, 128
          %s1760 = scalar_lea.hbm %s7, %s1759
          %s1761 = sshll.u32 %s1731, 4
          %s1762 = int_to_ptr.vmem [resolvable:$true] %s1761
          %1767 = dma.vmem_to_hbm [thread:$0]  %s1762, 256, %s1760, %s1728, 128, 128, 8
        $region56: #{tpu_custom_call.1} parent=43 // pred_fallthru
          _
      $region44: #{tpu_custom_call.1} parent=5 // pred_fallthru
        _
      %p1768 = scmp.le.s32.totalorder 2, %s21
      // Predicated region
      $region57: #{tpu_custom_call.1} parent=5 // pred_check
        %p1769 = pneg %p1768
      $region58: #{tpu_custom_call.1} parent=5 // pred_check_branch
        %1771 = sbr.rel (%p1769) target = $region60
      $region59: #{tpu_custom_call.1} parent=5 // pred_region
        %s1772 = ssub.s32 %s21, 2
        // Predicated region
        $region61: #{tpu_custom_call.1} parent=59 // pred_check
          %p1773 = pneg %p202
        $region62: #{tpu_custom_call.1} parent=59 // pred_check_branch
          %1775 = sbr.rel (%p1773) target = $region64
        $region63: #{tpu_custom_call.1} parent=59 // pred_region
          %s1776 = sand.u32 %s187, 1
          %s1777 = scalar_lea.sflag [#allocation4], %s1776
          %s1778 = sand.u32 %s187, 1
          %s1779 = smul.addr %s1778, 16
          %s1780 = scalar_lea.vmem [#allocation5], %s1779
          %1781 = dma.done %s1777, 256
        $region64: #{tpu_custom_call.1} parent=59 // pred_fallthru
          _
        // Predicated region
        $region65: #{tpu_custom_call.1} parent=59 // pred_check
          %p1782 = pneg %p230
        $region66: #{tpu_custom_call.1} parent=59 // pred_check_branch
          %1784 = sbr.rel (%p1782) target = $region68
        $region67: #{tpu_custom_call.1} parent=59 // pred_region
          %s1785 = sand.u32 %s215, 1
          %s1786 = scalar_lea.sflag [#allocation7], %s1785
          %s1787 = sand.u32 %s215, 1
          %s1788 = smul.addr %s1787, 16
          %s1789 = scalar_lea.vmem [#allocation6], %s1788
          %1790 = dma.done %s1786, 256
        $region68: #{tpu_custom_call.1} parent=59 // pred_fallthru
          _
      $region60: #{tpu_custom_call.1} parent=5 // pred_fallthru
        _
    $region6: #{tpu_custom_call.1} parent=1 // loop_footer
      %s25 = sadd.s32 1, %s21
    $region7: #{tpu_custom_call.1} parent=1 // loop_footer_branch
      %20 = sbr.rel target = $region3
    $region8: #{tpu_custom_call.1} parent=1 // loop_exit
      _
    %1791 = vsyncpa [#allocation3], 1
    %s1792 = scalar_lea.sflag [#allocation3], 1
    %1793 = vsyncpa %s1792, 1
    %1794 = vsyncpa [#allocation4], 1
    %s1795 = scalar_lea.sflag [#allocation4], 1
    %1796 = vsyncpa %s1795, 1
    %1797 = vsyncpa [#allocation7], 1
    %s1798 = scalar_lea.sflag [#allocation7], 1
    %1799 = vsyncpa %s1798, 1

</llo_original>
